<compile_context>
chip_gen: v6e
topology: v6e:2x2x1
jax: 0.10.0
libtpu: 0.0.40
codegen_flags: <defaults>
</compile_context>

<pallas_src>
import jax
import jax.numpy as jnp
from jax import lax
from jax.experimental import pallas as pl
from jax.experimental.pallas import tpu as pltpu


def _vmem_spec():
    return pl.BlockSpec(memory_space=pltpu.MemorySpace.VMEM)


# --------------------------- the single fused kernel --------------------------------------------
def fused_lang_rec_loss_kernel(
        slr_in_ref,                           # (B, 3D) f32   cat([sub, loc, rel], 1)
        labels_ref,                           # (T*B, 2) i32  col0=enc, col1=dec, time-major (row=t*B+b)
        slr_w_ref, slr_b_ref,                 # (3D, D), (1, D)
        gate_tbl_ref,                         # (V, 4H)  relu(emb@mlp_w+mlp_b)@W_ih[0:D] + (b_ih+b_hh)
        wih_ctx_ref,                          # (D, 4H)  W_ih[D:2D] (slr context, t=0 only)
        whh_ref,                              # (H, 4H)
        fc_w_ref, fc_b_ref,                   # (H, V), (1, V)
        o_ref,                                # (1, 1) f32 output
        out_scr):                             # VMEM scratch: (T*B, H) f32 (LSTM outputs, never hit HBM)
    f32 = jnp.float32
    B, D3 = slr_in_ref.shape
    D = D3 // 3
    TB = labels_ref.shape[0]
    T = TB // B
    V = gate_tbl_ref.shape[0]
    H = whh_ref.shape[0]

    labels = labels_ref[...]                                                           # (T*B, 2) i32
    enc = labels[:, 0:1]                                                               # (T*B, 1)
    dec = labels[:, 1:2]                                                               # (T*B, 1)

    # ---- slr_mlp: ReLU(Linear(3D -> D)) as ONE matmul (concat done in wrapper) ------------------
    slr = jnp.maximum(
        jnp.dot(slr_in_ref[...], slr_w_ref[...], preferred_element_type=f32) + slr_b_ref[...],
        0.0)                                                                           # (B, D)
    # slr context enters only the t=0 gate pre-activation (upper half of original W_ih)
    slr_gate = jnp.dot(slr, wih_ctx_ref[...], preferred_element_type=f32)              # (B, 4H)

    # ---- token prologue: one one-hot matmul against the folded per-vocab gate table -------------
    vocab_iota = lax.broadcasted_iota(jnp.int32, (TB, V), 1)
    onehot_enc = (enc == vocab_iota).astype(f32)                                       # (T*B, V)
    gates_in = jnp.dot(onehot_enc, gate_tbl_ref[...], preferred_element_type=f32)      # (T*B, 4H)

    # ---- single-layer unidirectional LSTM, statically unrolled over T (PyTorch gate order i,f,g,o)
    whh = whh_ref[...]                                                                 # loop-invariant
    h = jnp.zeros((B, H), f32)
    c = jnp.zeros((B, H), f32)
    for t in range(T):
        gin = gates_in[t * B:(t + 1) * B, :]                                           # (B, 4H)
        if t == 0:
            # h == 0 and c == 0 at t = 0: skip h@W_hh and the f*c term entirely.
            pre = gin + slr_gate
        else:
            pre = gin + jnp.dot(h, whh, preferred_element_type=f32)
        sig = jax.nn.sigmoid(pre)                      # one full-vreg sigmoid covers i, f, o
        g = jnp.tanh(pre[:, 2 * H:3 * H])
        if t == 0:
            c = sig[:, 0:H] * g
        else:
            c = sig[:, H:2 * H] * c + sig[:, 0:H] * g
        h = sig[:, 3 * H:4 * H] * jnp.tanh(c)
        out_scr[t * B:(t + 1) * B, :] = h
    # NOTE: h/c keep updating on padded (trailing) steps; only the outputs are masked below.
    # This matches pack/pad_packed semantics for the returned outputs (the final hidden state
    # is never consumed by this loss).

    # ---- pack_padded / pad_packed semantics: zero outputs at t >= length_i ----------------------
    enc_mask = (enc != 0).astype(f32)                                                  # (T*B, 1)
    out = out_scr[...] * enc_mask                                                      # (T*B, H)

    # ---- fc + cross-entropy + masked mean --------------------------------------------------------
    logits = jnp.dot(out, fc_w_ref[...], preferred_element_type=f32) + fc_b_ref[...]   # (T*B, V)
    onehot_dec = (dec == vocab_iota).astype(f32)                                       # (T*B, V)
    mx = jnp.max(logits, axis=-1, keepdims=True)
    lse = jnp.log(jnp.sum(jnp.exp(logits - mx), axis=-1, keepdims=True)) + mx          # (T*B, 1)
    picked = jnp.sum(logits * onehot_dec, axis=-1, keepdims=True)                      # (T*B, 1)
    dec_mask = (dec != 0).astype(f32)                                                  # (T*B, 1)
    per = (lse - picked) * dec_mask
    num = jnp.sum(per, axis=0, keepdims=True)                                          # (1, 1)
    den = jnp.sum(dec_mask, axis=0, keepdims=True)                                     # (1, 1)
    # guard the all-padding corner case (reference would divide by zero)
    o_ref[...] = num / jnp.maximum(den, 1.0)


# --------------------------- wrapper: one pallas_call --------------------------------------------
def lang_lang_reconstruct_loss(params, sub_emb, loc_emb, rel_emb, enc_labels, dec_labels):
    hp = lax.Precision.HIGHEST
    B, T = enc_labels.shape
    D = params["mlp_w"].shape[1]
    H = params["lstm_whh"].shape[0]

    # Exact fold of the per-token path into a (V, 4H) gate table (O(V)=32-row precompute; XLA
    # evaluates it once outside the kernel). Includes the combined LSTM bias.
    emb2_tbl = jnp.maximum(
        jnp.dot(params["embedding"], params["mlp_w"], precision=hp) + params["mlp_b"], 0.0)   # (V, D)
    gate_tbl = jnp.dot(emb2_tbl, params["lstm_wih"][0:D, :], precision=hp) + params["lstm_b"]  # (V, 4H)
    wih_ctx = params["lstm_wih"][D:2 * D, :]                                                   # (D, 4H)

    # Single (B, 3D) operand for the slr MLP.
    slr_in = jnp.concatenate([sub_emb, loc_emb, rel_emb], axis=1)

    # Time-major flattening (row = t*B + b) so each LSTM step reads a contiguous, sublane-aligned
    # block of B rows of the precomputed gate inputs; enc/dec packed into one (T*B, 2) int32 input.
    enc_tm = jnp.transpose(enc_labels, (1, 0)).reshape(T * B, 1)
    dec_tm = jnp.transpose(dec_labels, (1, 0)).reshape(T * B, 1)
    labels_tm = jnp.concatenate([enc_tm, dec_tm], axis=1).astype(jnp.int32)

    # Grid-less single launch: every intermediate stays VMEM-resident (<1 MiB at these shapes,
    # well under the scoped VMEM limit on v5e/v6e/v7x).
    # TODO(synk): add a parallel grid axis over batches if multiple independent loss instances
    # are evaluated per call (v7x megacore), and re-derive VMEM residency before scaling H/T/B.
    loss = pl.pallas_call(
        fused_lang_rec_loss_kernel,
        out_shape=jax.ShapeDtypeStruct((1, 1), jnp.float32),
        in_specs=[_vmem_spec()] * 9,
        out_specs=_vmem_spec(),
        scratch_shapes=[pltpu.VMEM((T * B, H), jnp.float32)],
    )(slr_in, labels_tm,
      params["slr_w"], params["slr_b"],
      gate_tbl, wih_ctx, params["lstm_whh"],
      params["fc_w"], params["fc_b"])
    return loss[0, 0]


# --------------------------- pure-JAX reference (for self-check) ---------------------------------
def reference_loss(params, sub, loc, rel, enc_labels, dec_labels):
    hp = lax.Precision.HIGHEST
    B, T = enc_labels.shape
    V, E = params["embedding"].shape
    D = params["mlp_w"].shape[1]
    H = params["lstm_whh"].shape[0]

    slr_in = jnp.concatenate([sub, loc, rel], axis=1)
    slr = jnp.maximum(jnp.dot(slr_in, params["slr_w"], precision=hp) + params["slr_b"], 0.0)

    embedded = jnp.take(params["embedding"], enc_labels, axis=0)                      # (B, T, E)
    emb2 = jnp.maximum(jnp.dot(embedded.reshape(B * T, E), params["mlp_w"], precision=hp)
                       + params["mlp_b"], 0.0).reshape(B, T, D)

    slr_seq = jnp.concatenate([slr[:, None, :], jnp.zeros((B, T - 1, D), jnp.float32)], axis=1)
    rnn_in = jnp.concatenate([emb2, slr_seq], axis=2)                                 # (B, T, 2D)

    wih, whh, b = params["lstm_wih"], params["lstm_whh"], params["lstm_b"]
    h = jnp.zeros((B, H), jnp.float32)
    c = jnp.zeros((B, H), jnp.float32)
    outs = []
    for t in range(T):
        g = jnp.dot(rnn_in[:, t, :], wih, precision=hp) + jnp.dot(h, whh, precision=hp) + b
        i_g = jax.nn.sigmoid(g[:, 0:H])
        f_g = jax.nn.sigmoid(g[:, H:2 * H])
        g_g = jnp.tanh(g[:, 2 * H:3 * H])
        o_g = jax.nn.sigmoid(g[:, 3 * H:4 * H])
        c = f_g * c + i_g * g_g
        h = o_g * jnp.tanh(c)
        outs.append(h)
    out = jnp.stack(outs, axis=1)                                                     # (B, T, H)
    out = out * (enc_labels != 0)[:, :, None].astype(jnp.float32)

    logits = jnp.dot(out.reshape(B * T, H), params["fc_w"], precision=hp) + params["fc_b"]
    dec = dec_labels.reshape(-1)
    logp = jax.nn.log_softmax(logits, axis=-1)
    per = -jnp.take_along_axis(logp, dec[:, None], axis=1)[:, 0]
    mask = (dec != 0).astype(jnp.float32)
    return jnp.sum(per * mask) / jnp.maximum(jnp.sum(mask), 1.0)


if __name__ == "__main__":
    key = jax.random.PRNGKey(0)
    B, T = 8, 8        # sent_num, sent_length
    V = 32             # vocab_size
    E = 32             # word_embedding_size
    D = 32             # word_vec_size  (must equal E for the reference concat to be valid)
    H = 32             # rnn_hidden_size (n_layers=1, unidirectional LSTM)

    keys = jax.random.split(key, 12)
    s = 0.5
    params = {
        "embedding": jax.random.normal(keys[0], (V, E), jnp.float32) * s,
        "slr_w":     jax.random.normal(keys[1], (3 * D, D), jnp.float32) * s,
        "slr_b":     jax.random.normal(keys[2], (1, D), jnp.float32) * s,
        "mlp_w":     jax.random.normal(keys[3], (E, D), jnp.float32) * s,
        "mlp_b":     jax.random.normal(keys[4], (1, D), jnp.float32) * s,
        "lstm_wih":  jax.random.normal(keys[5], (2 * D, 4 * H), jnp.float32) * s,
        "lstm_whh":  jax.random.normal(keys[6], (H, 4 * H), jnp.float32) * s,
        "lstm_b":    jax.random.normal(keys[7], (1, 4 * H), jnp.float32) * s,  # b_ih + b_hh combined
        "fc_w":      jax.random.normal(keys[8], (H, V), jnp.float32) * s,
        "fc_b":      jax.random.normal(keys[9], (1, V), jnp.float32) * s,
    }

    sub = jax.random.normal(keys[10], (B, D), jnp.float32)
    loc = jax.random.normal(keys[11], (B, D), jnp.float32)
    rel = jax.random.normal(jax.random.PRNGKey(1), (B, D), jnp.float32)

    # variable-length sequences, trailing padding, max length == T (reference asserts this)
    lengths = jnp.array([T, 5, 6, T, 3, 7, 4, T], dtype=jnp.int32)
    valid = jnp.arange(T)[None, :] < lengths[:, None]
    enc_body = jax.random.randint(jax.random.PRNGKey(2), (B, T), 1, V)
    dec_body = jax.random.randint(jax.random.PRNGKey(3), (B, T), 1, V)
    enc_labels = jnp.where(valid, enc_body, 0).astype(jnp.int32)
    dec_labels = jnp.where(valid, dec_body, 0).astype(jnp.int32)

    loss_fn = jax.jit(lang_lang_reconstruct_loss)
    loss = jax.block_until_ready(loss_fn(params, sub, loc, rel, enc_labels, dec_labels))
    ref = jax.block_until_ready(reference_loss(params, sub, loc, rel, enc_labels, dec_labels))

    assert bool(jnp.isfinite(loss))
    assert abs(float(loss) - float(ref)) < 2e-3, (float(loss), float(ref))
    print("KERNEL_OK")
</pallas_src>

<mosaic_0001>
module attributes {stable_mosaic.version = 11 : i64} {
  func.func @fused_lang_rec_loss_kernel(%arg0: memref<8x96xf32, #tpu.memory_space<vmem>>, %arg1: memref<64x2xi32, #tpu.memory_space<vmem>>, %arg2: memref<96x32xf32, #tpu.memory_space<vmem>>, %arg3: memref<1x32xf32, #tpu.memory_space<vmem>>, %arg4: memref<32x128xf32, #tpu.memory_space<vmem>>, %arg5: memref<32x128xf32, #tpu.memory_space<vmem>>, %arg6: memref<32x128xf32, #tpu.memory_space<vmem>>, %arg7: memref<32x32xf32, #tpu.memory_space<vmem>>, %arg8: memref<1x32xf32, #tpu.memory_space<vmem>>, %arg9: memref<1x1xf32, #tpu.memory_space<vmem>>, %arg10: memref<64x32xf32, #tpu.memory_space<vmem>>) attributes {dimension_semantics = [], scalar_prefetch = 0 : i64, scratch_operands = 1 : i64, tpu.core_type = #tpu.core_type<tc>} {
    %c0 = arith.constant 0 : index
    %c0_0 = arith.constant 0 : index
    %0 = vector.load %arg1[%c0, %c0_0] : memref<64x2xi32, #tpu.memory_space<vmem>>, vector<64x2xi32>
    %1 = vector.extract_strided_slice %0 {offsets = [0, 0], sizes = [64, 1], strides = [1, 1]} : vector<64x2xi32> to vector<64x1xi32>
    %2 = vector.extract_strided_slice %0 {offsets = [0, 1], sizes = [64, 1], strides = [1, 1]} : vector<64x2xi32> to vector<64x1xi32>
    %c0_1 = arith.constant 0 : index
    %c0_2 = arith.constant 0 : index
    %3 = vector.load %arg0[%c0_1, %c0_2] : memref<8x96xf32, #tpu.memory_space<vmem>>, vector<8x96xf32>
    %c0_3 = arith.constant 0 : index
    %c0_4 = arith.constant 0 : index
    %4 = vector.load %arg2[%c0_3, %c0_4] : memref<96x32xf32, #tpu.memory_space<vmem>>, vector<96x32xf32>
    %cst = arith.constant dense<0.000000e+00> : vector<8x32xf32>
    %5 = tpu.matmul %3, %4, %cst {dimension_numbers = #tpu.dot_dimension_numbers<[1], [0], [0], [1], [0, 0, 1, 1], [], []>} : vector<8x96xf32>, vector<96x32xf32>, vector<8x32xf32> -> vector<8x32xf32>
    %c0_5 = arith.constant 0 : index
    %c0_6 = arith.constant 0 : index
    %6 = vector.load %arg3[%c0_5, %c0_6] : memref<1x32xf32, #tpu.memory_space<vmem>>, vector<1x32xf32>
    %7 = vector.broadcast %6 : vector<1x32xf32> to vector<8x32xf32>
    %8 = arith.addf %5, %7 : vector<8x32xf32>
    %cst_7 = arith.constant 0.000000e+00 : f32
    %9 = vector.broadcast %cst_7 : f32 to vector<8x32xf32>
    %10 = arith.maximumf %8, %9 : vector<8x32xf32>
    %c0_8 = arith.constant 0 : index
    %c0_9 = arith.constant 0 : index
    %11 = vector.load %arg5[%c0_8, %c0_9] : memref<32x128xf32, #tpu.memory_space<vmem>>, vector<32x128xf32>
    %cst_10 = arith.constant dense<0.000000e+00> : vector<8x128xf32>
    %12 = tpu.matmul %10, %11, %cst_10 {dimension_numbers = #tpu.dot_dimension_numbers<[1], [0], [0], [1], [0, 0, 1, 1], [], []>} : vector<8x32xf32>, vector<32x128xf32>, vector<8x128xf32> -> vector<8x128xf32>
    %13 = tpu.iota {dimensions = array<i32: 1>} : vector<64x32xi32>
    %14 = vector.broadcast %1 : vector<64x1xi32> to vector<64x32xi32>
    %15 = arith.cmpi eq, %14, %13 : vector<64x32xi32>
    %16 = arith.extui %15 : vector<64x32xi1> to vector<64x32xi32>
    %17 = arith.sitofp %16 : vector<64x32xi32> to vector<64x32xf32>
    %c0_11 = arith.constant 0 : index
    %c0_12 = arith.constant 0 : index
    %18 = vector.load %arg4[%c0_11, %c0_12] : memref<32x128xf32, #tpu.memory_space<vmem>>, vector<32x128xf32>
    %cst_13 = arith.constant dense<0.000000e+00> : vector<64x128xf32>
    %19 = tpu.matmul %17, %18, %cst_13 {dimension_numbers = #tpu.dot_dimension_numbers<[1], [0], [0], [1], [0, 0, 1, 1], [], []>} : vector<64x32xf32>, vector<32x128xf32>, vector<64x128xf32> -> vector<64x128xf32>
    %c0_14 = arith.constant 0 : index
    %c0_15 = arith.constant 0 : index
    %20 = vector.load %arg6[%c0_14, %c0_15] : memref<32x128xf32, #tpu.memory_space<vmem>>, vector<32x128xf32>
    %21 = vector.extract_strided_slice %19 {offsets = [0, 0], sizes = [8, 128], strides = [1, 1]} : vector<64x128xf32> to vector<8x128xf32>
    %22 = arith.addf %21, %12 : vector<8x128xf32>
    %23 = arith.negf %22 : vector<8x128xf32>
    %24 = math.exp %23 : vector<8x128xf32>
    %cst_16 = arith.constant 1.000000e+00 : f32
    %25 = vector.broadcast %cst_16 : f32 to vector<8x128xf32>
    %26 = arith.addf %25, %24 : vector<8x128xf32>
    %27 = arith.divf %25, %26 : vector<8x128xf32>
    %28 = vector.extract_strided_slice %22 {offsets = [0, 64], sizes = [8, 32], strides = [1, 1]} : vector<8x128xf32> to vector<8x32xf32>
    %29 = math.tanh %28 : vector<8x32xf32>
    %30 = vector.extract_strided_slice %27 {offsets = [0, 0], sizes = [8, 32], strides = [1, 1]} : vector<8x128xf32> to vector<8x32xf32>
    %31 = arith.mulf %30, %29 : vector<8x32xf32>
    %32 = vector.extract_strided_slice %27 {offsets = [0, 96], sizes = [8, 32], strides = [1, 1]} : vector<8x128xf32> to vector<8x32xf32>
    %33 = math.tanh %31 : vector<8x32xf32>
    %34 = arith.mulf %32, %33 : vector<8x32xf32>
    %c0_17 = arith.constant 0 : index
    %c0_18 = arith.constant 0 : index
    %35 = vector.load %arg10[%c0_17, %c0_18] : memref<64x32xf32, #tpu.memory_space<vmem>>, vector<8x32xf32>
    tpu.vector_store %arg10[%c0_17, %c0_18], %34 {strides = array<i32>} : memref<64x32xf32, #tpu.memory_space<vmem>>, vector<8x32xf32>,
    %36 = vector.extract_strided_slice %19 {offsets = [8, 0], sizes = [8, 128], strides = [1, 1]} : vector<64x128xf32> to vector<8x128xf32>
    %cst_19 = arith.constant dense<0.000000e+00> : vector<8x128xf32>
    %37 = tpu.matmul %34, %20, %cst_19 {dimension_numbers = #tpu.dot_dimension_numbers<[1], [0], [0], [1], [0, 0, 1, 1], [], []>} : vector<8x32xf32>, vector<32x128xf32>, vector<8x128xf32> -> vector<8x128xf32>
    %38 = arith.addf %36, %37 : vector<8x128xf32>
    %39 = arith.negf %38 : vector<8x128xf32>
    %40 = math.exp %39 : vector<8x128xf32>
    %cst_20 = arith.constant 1.000000e+00 : f32
    %41 = vector.broadcast %cst_20 : f32 to vector<8x128xf32>
    %42 = arith.addf %41, %40 : vector<8x128xf32>
    %43 = arith.divf %41, %42 : vector<8x128xf32>
    %44 = vector.extract_strided_slice %38 {offsets = [0, 64], sizes = [8, 32], strides = [1, 1]} : vector<8x128xf32> to vector<8x32xf32>
    %45 = math.tanh %44 : vector<8x32xf32>
    %46 = vector.extract_strided_slice %43 {offsets = [0, 32], sizes = [8, 32], strides = [1, 1]} : vector<8x128xf32> to vector<8x32xf32>
    %47 = arith.mulf %46, %31 : vector<8x32xf32>
    %48 = vector.extract_strided_slice %43 {offsets = [0, 0], sizes = [8, 32], strides = [1, 1]} : vector<8x128xf32> to vector<8x32xf32>
    %49 = arith.mulf %48, %45 : vector<8x32xf32>
    %50 = arith.addf %47, %49 : vector<8x32xf32>
    %51 = vector.extract_strided_slice %43 {offsets = [0, 96], sizes = [8, 32], strides = [1, 1]} : vector<8x128xf32> to vector<8x32xf32>
    %52 = math.tanh %50 : vector<8x32xf32>
    %53 = arith.mulf %51, %52 : vector<8x32xf32>
    %c8 = arith.constant 8 : index
    %c0_21 = arith.constant 0 : index
    %54 = vector.load %arg10[%c8, %c0_21] : memref<64x32xf32, #tpu.memory_space<vmem>>, vector<8x32xf32>
    tpu.vector_store %arg10[%c8, %c0_21], %53 {strides = array<i32>} : memref<64x32xf32, #tpu.memory_space<vmem>>, vector<8x32xf32>,
    %55 = vector.extract_strided_slice %19 {offsets = [16, 0], sizes = [8, 128], strides = [1, 1]} : vector<64x128xf32> to vector<8x128xf32>
    %cst_22 = arith.constant dense<0.000000e+00> : vector<8x128xf32>
    %56 = tpu.matmul %53, %20, %cst_22 {dimension_numbers = #tpu.dot_dimension_numbers<[1], [0], [0], [1], [0, 0, 1, 1], [], []>} : vector<8x32xf32>, vector<32x128xf32>, vector<8x128xf32> -> vector<8x128xf32>
    %57 = arith.addf %55, %56 : vector<8x128xf32>
    %58 = arith.negf %57 : vector<8x128xf32>
    %59 = math.exp %58 : vector<8x128xf32>
    %cst_23 = arith.constant 1.000000e+00 : f32
    %60 = vector.broadcast %cst_23 : f32 to vector<8x128xf32>
    %61 = arith.addf %60, %59 : vector<8x128xf32>
    %62 = arith.divf %60, %61 : vector<8x128xf32>
    %63 = vector.extract_strided_slice %57 {offsets = [0, 64], sizes = [8, 32], strides = [1, 1]} : vector<8x128xf32> to vector<8x32xf32>
    %64 = math.tanh %63 : vector<8x32xf32>
    %65 = vector.extract_strided_slice %62 {offsets = [0, 32], sizes = [8, 32], strides = [1, 1]} : vector<8x128xf32> to vector<8x32xf32>
    %66 = arith.mulf %65, %50 : vector<8x32xf32>
    %67 = vector.extract_strided_slice %62 {offsets = [0, 0], sizes = [8, 32], strides = [1, 1]} : vector<8x128xf32> to vector<8x32xf32>
    %68 = arith.mulf %67, %64 : vector<8x32xf32>
    %69 = arith.addf %66, %68 : vector<8x32xf32>
    %70 = vector.extract_strided_slice %62 {offsets = [0, 96], sizes = [8, 32], strides = [1, 1]} : vector<8x128xf32> to vector<8x32xf32>
    %71 = math.tanh %69 : vector<8x32xf32>
    %72 = arith.mulf %70, %71 : vector<8x32xf32>
    %c16 = arith.constant 16 : index
    %c0_24 = arith.constant 0 : index
    %73 = vector.load %arg10[%c16, %c0_24] : memref<64x32xf32, #tpu.memory_space<vmem>>, vector<8x32xf32>
    tpu.vector_store %arg10[%c16, %c0_24], %72 {strides = array<i32>} : memref<64x32xf32, #tpu.memory_space<vmem>>, vector<8x32xf32>,
    %74 = vector.extract_strided_slice %19 {offsets = [24, 0], sizes = [8, 128], strides = [1, 1]} : vector<64x128xf32> to vector<8x128xf32>
    %cst_25 = arith.constant dense<0.000000e+00> : vector<8x128xf32>
    %75 = tpu.matmul %72, %20, %cst_25 {dimension_numbers = #tpu.dot_dimension_numbers<[1], [0], [0], [1], [0, 0, 1, 1], [], []>} : vector<8x32xf32>, vector<32x128xf32>, vector<8x128xf32> -> vector<8x128xf32>
    %76 = arith.addf %74, %75 : vector<8x128xf32>
    %77 = arith.negf %76 : vector<8x128xf32>
    %78 = math.exp %77 : vector<8x128xf32>
    %cst_26 = arith.constant 1.000000e+00 : f32
    %79 = vector.broadcast %cst_26 : f32 to vector<8x128xf32>
    %80 = arith.addf %79, %78 : vector<8x128xf32>
    %81 = arith.divf %79, %80 : vector<8x128xf32>
    %82 = vector.extract_strided_slice %76 {offsets = [0, 64], sizes = [8, 32], strides = [1, 1]} : vector<8x128xf32> to vector<8x32xf32>
    %83 = math.tanh %82 : vector<8x32xf32>
    %84 = vector.extract_strided_slice %81 {offsets = [0, 32], sizes = [8, 32], strides = [1, 1]} : vector<8x128xf32> to vector<8x32xf32>
    %85 = arith.mulf %84, %69 : vector<8x32xf32>
    %86 = vector.extract_strided_slice %81 {offsets = [0, 0], sizes = [8, 32], strides = [1, 1]} : vector<8x128xf32> to vector<8x32xf32>
    %87 = arith.mulf %86, %83 : vector<8x32xf32>
    %88 = arith.addf %85, %87 : vector<8x32xf32>
    %89 = vector.extract_strided_slice %81 {offsets = [0, 96], sizes = [8, 32], strides = [1, 1]} : vector<8x128xf32> to vector<8x32xf32>
    %90 = math.tanh %88 : vector<8x32xf32>
    %91 = arith.mulf %89, %90 : vector<8x32xf32>
    %c24 = arith.constant 24 : index
    %c0_27 = arith.constant 0 : index
    %92 = vector.load %arg10[%c24, %c0_27] : memref<64x32xf32, #tpu.memory_space<vmem>>, vector<8x32xf32>
    tpu.vector_store %arg10[%c24, %c0_27], %91 {strides = array<i32>} : memref<64x32xf32, #tpu.memory_space<vmem>>, vector<8x32xf32>,
    %93 = vector.extract_strided_slice %19 {offsets = [32, 0], sizes = [8, 128], strides = [1, 1]} : vector<64x128xf32> to vector<8x128xf32>
    %cst_28 = arith.constant dense<0.000000e+00> : vector<8x128xf32>
    %94 = tpu.matmul %91, %20, %cst_28 {dimension_numbers = #tpu.dot_dimension_numbers<[1], [0], [0], [1], [0, 0, 1, 1], [], []>} : vector<8x32xf32>, vector<32x128xf32>, vector<8x128xf32> -> vector<8x128xf32>
    %95 = arith.addf %93, %94 : vector<8x128xf32>
    %96 = arith.negf %95 : vector<8x128xf32>
    %97 = math.exp %96 : vector<8x128xf32>
    %cst_29 = arith.constant 1.000000e+00 : f32
    %98 = vector.broadcast %cst_29 : f32 to vector<8x128xf32>
    %99 = arith.addf %98, %97 : vector<8x128xf32>
    %100 = arith.divf %98, %99 : vector<8x128xf32>
    %101 = vector.extract_strided_slice %95 {offsets = [0, 64], sizes = [8, 32], strides = [1, 1]} : vector<8x128xf32> to vector<8x32xf32>
    %102 = math.tanh %101 : vector<8x32xf32>
    %103 = vector.extract_strided_slice %100 {offsets = [0, 32], sizes = [8, 32], strides = [1, 1]} : vector<8x128xf32> to vector<8x32xf32>
    %104 = arith.mulf %103, %88 : vector<8x32xf32>
    %105 = vector.extract_strided_slice %100 {offsets = [0, 0], sizes = [8, 32], strides = [1, 1]} : vector<8x128xf32> to vector<8x32xf32>
    %106 = arith.mulf %105, %102 : vector<8x32xf32>
    %107 = arith.addf %104, %106 : vector<8x32xf32>
    %108 = vector.extract_strided_slice %100 {offsets = [0, 96], sizes = [8, 32], strides = [1, 1]} : vector<8x128xf32> to vector<8x32xf32>
    %109 = math.tanh %107 : vector<8x32xf32>
    %110 = arith.mulf %108, %109 : vector<8x32xf32>
    %c32 = arith.constant 32 : index
    %c0_30 = arith.constant 0 : index
    %111 = vector.load %arg10[%c32, %c0_30] : memref<64x32xf32, #tpu.memory_space<vmem>>, vector<8x32xf32>
    tpu.vector_store %arg10[%c32, %c0_30], %110 {strides = array<i32>} : memref<64x32xf32, #tpu.memory_space<vmem>>, vector<8x32xf32>,
    %112 = vector.extract_strided_slice %19 {offsets = [40, 0], sizes = [8, 128], strides = [1, 1]} : vector<64x128xf32> to vector<8x128xf32>
    %cst_31 = arith.constant dense<0.000000e+00> : vector<8x128xf32>
    %113 = tpu.matmul %110, %20, %cst_31 {dimension_numbers = #tpu.dot_dimension_numbers<[1], [0], [0], [1], [0, 0, 1, 1], [], []>} : vector<8x32xf32>, vector<32x128xf32>, vector<8x128xf32> -> vector<8x128xf32>
    %114 = arith.addf %112, %113 : vector<8x128xf32>
    %115 = arith.negf %114 : vector<8x128xf32>
    %116 = math.exp %115 : vector<8x128xf32>
    %cst_32 = arith.constant 1.000000e+00 : f32
    %117 = vector.broadcast %cst_32 : f32 to vector<8x128xf32>
    %118 = arith.addf %117, %116 : vector<8x128xf32>
    %119 = arith.divf %117, %118 : vector<8x128xf32>
    %120 = vector.extract_strided_slice %114 {offsets = [0, 64], sizes = [8, 32], strides = [1, 1]} : vector<8x128xf32> to vector<8x32xf32>
    %121 = math.tanh %120 : vector<8x32xf32>
    %122 = vector.extract_strided_slice %119 {offsets = [0, 32], sizes = [8, 32], strides = [1, 1]} : vector<8x128xf32> to vector<8x32xf32>
    %123 = arith.mulf %122, %107 : vector<8x32xf32>
    %124 = vector.extract_strided_slice %119 {offsets = [0, 0], sizes = [8, 32], strides = [1, 1]} : vector<8x128xf32> to vector<8x32xf32>
    %125 = arith.mulf %124, %121 : vector<8x32xf32>
    %126 = arith.addf %123, %125 : vector<8x32xf32>
    %127 = vector.extract_strided_slice %119 {offsets = [0, 96], sizes = [8, 32], strides = [1, 1]} : vector<8x128xf32> to vector<8x32xf32>
    %128 = math.tanh %126 : vector<8x32xf32>
    %129 = arith.mulf %127, %128 : vector<8x32xf32>
    %c40 = arith.constant 40 : index
    %c0_33 = arith.constant 0 : index
    %130 = vector.load %arg10[%c40, %c0_33] : memref<64x32xf32, #tpu.memory_space<vmem>>, vector<8x32xf32>
    tpu.vector_store %arg10[%c40, %c0_33], %129 {strides = array<i32>} : memref<64x32xf32, #tpu.memory_space<vmem>>, vector<8x32xf32>,
    %131 = vector.extract_strided_slice %19 {offsets = [48, 0], sizes = [8, 128], strides = [1, 1]} : vector<64x128xf32> to vector<8x128xf32>
    %cst_34 = arith.constant dense<0.000000e+00> : vector<8x128xf32>
    %132 = tpu.matmul %129, %20, %cst_34 {dimension_numbers = #tpu.dot_dimension_numbers<[1], [0], [0], [1], [0, 0, 1, 1], [], []>} : vector<8x32xf32>, vector<32x128xf32>, vector<8x128xf32> -> vector<8x128xf32>
    %133 = arith.addf %131, %132 : vector<8x128xf32>
    %134 = arith.negf %133 : vector<8x128xf32>
    %135 = math.exp %134 : vector<8x128xf32>
    %cst_35 = arith.constant 1.000000e+00 : f32
    %136 = vector.broadcast %cst_35 : f32 to vector<8x128xf32>
    %137 = arith.addf %136, %135 : vector<8x128xf32>
    %138 = arith.divf %136, %137 : vector<8x128xf32>
    %139 = vector.extract_strided_slice %133 {offsets = [0, 64], sizes = [8, 32], strides = [1, 1]} : vector<8x128xf32> to vector<8x32xf32>
    %140 = math.tanh %139 : vector<8x32xf32>
    %141 = vector.extract_strided_slice %138 {offsets = [0, 32], sizes = [8, 32], strides = [1, 1]} : vector<8x128xf32> to vector<8x32xf32>
    %142 = arith.mulf %141, %126 : vector<8x32xf32>
    %143 = vector.extract_strided_slice %138 {offsets = [0, 0], sizes = [8, 32], strides = [1, 1]} : vector<8x128xf32> to vector<8x32xf32>
    %144 = arith.mulf %143, %140 : vector<8x32xf32>
    %145 = arith.addf %142, %144 : vector<8x32xf32>
    %146 = vector.extract_strided_slice %138 {offsets = [0, 96], sizes = [8, 32], strides = [1, 1]} : vector<8x128xf32> to vector<8x32xf32>
    %147 = math.tanh %145 : vector<8x32xf32>
    %148 = arith.mulf %146, %147 : vector<8x32xf32>
    %c48 = arith.constant 48 : index
    %c0_36 = arith.constant 0 : index
    %149 = vector.load %arg10[%c48, %c0_36] : memref<64x32xf32, #tpu.memory_space<vmem>>, vector<8x32xf32>
    tpu.vector_store %arg10[%c48, %c0_36], %148 {strides = array<i32>} : memref<64x32xf32, #tpu.memory_space<vmem>>, vector<8x32xf32>,
    %150 = vector.extract_strided_slice %19 {offsets = [56, 0], sizes = [8, 128], strides = [1, 1]} : vector<64x128xf32> to vector<8x128xf32>
    %cst_37 = arith.constant dense<0.000000e+00> : vector<8x128xf32>
    %151 = tpu.matmul %148, %20, %cst_37 {dimension_numbers = #tpu.dot_dimension_numbers<[1], [0], [0], [1], [0, 0, 1, 1], [], []>} : vector<8x32xf32>, vector<32x128xf32>, vector<8x128xf32> -> vector<8x128xf32>
    %152 = arith.addf %150, %151 : vector<8x128xf32>
    %153 = arith.negf %152 : vector<8x128xf32>
    %154 = math.exp %153 : vector<8x128xf32>
    %cst_38 = arith.constant 1.000000e+00 : f32
    %155 = vector.broadcast %cst_38 : f32 to vector<8x128xf32>
    %156 = arith.addf %155, %154 : vector<8x128xf32>
    %157 = arith.divf %155, %156 : vector<8x128xf32>
    %158 = vector.extract_strided_slice %152 {offsets = [0, 64], sizes = [8, 32], strides = [1, 1]} : vector<8x128xf32> to vector<8x32xf32>
    %159 = math.tanh %158 : vector<8x32xf32>
    %160 = vector.extract_strided_slice %157 {offsets = [0, 32], sizes = [8, 32], strides = [1, 1]} : vector<8x128xf32> to vector<8x32xf32>
    %161 = arith.mulf %160, %145 : vector<8x32xf32>
    %162 = vector.extract_strided_slice %157 {offsets = [0, 0], sizes = [8, 32], strides = [1, 1]} : vector<8x128xf32> to vector<8x32xf32>
    %163 = arith.mulf %162, %159 : vector<8x32xf32>
    %164 = arith.addf %161, %163 : vector<8x32xf32>
    %165 = vector.extract_strided_slice %157 {offsets = [0, 96], sizes = [8, 32], strides = [1, 1]} : vector<8x128xf32> to vector<8x32xf32>
    %166 = math.tanh %164 : vector<8x32xf32>
    %167 = arith.mulf %165, %166 : vector<8x32xf32>
    %c56 = arith.constant 56 : index
    %c0_39 = arith.constant 0 : index
    %168 = vector.load %arg10[%c56, %c0_39] : memref<64x32xf32, #tpu.memory_space<vmem>>, vector<8x32xf32>
    tpu.vector_store %arg10[%c56, %c0_39], %167 {strides = array<i32>} : memref<64x32xf32, #tpu.memory_space<vmem>>, vector<8x32xf32>,
    %c0_i32 = arith.constant 0 : i32
    %169 = vector.broadcast %c0_i32 : i32 to vector<64x1xi32>
    %170 = arith.cmpi ne, %1, %169 : vector<64x1xi32>
    %171 = arith.extui %170 : vector<64x1xi1> to vector<64x1xi32>
    %172 = arith.sitofp %171 : vector<64x1xi32> to vector<64x1xf32>
    %c0_40 = arith.constant 0 : index
    %c0_41 = arith.constant 0 : index
    %173 = vector.load %arg10[%c0_40, %c0_41] : memref<64x32xf32, #tpu.memory_space<vmem>>, vector<64x32xf32>
    %174 = vector.broadcast %172 : vector<64x1xf32> to vector<64x32xf32>
    %175 = arith.mulf %173, %174 : vector<64x32xf32>
    %c0_42 = arith.constant 0 : index
    %c0_43 = arith.constant 0 : index
    %176 = vector.load %arg7[%c0_42, %c0_43] : memref<32x32xf32, #tpu.memory_space<vmem>>, vector<32x32xf32>
    %cst_44 = arith.constant dense<0.000000e+00> : vector<64x32xf32>
    %177 = tpu.matmul %175, %176, %cst_44 {dimension_numbers = #tpu.dot_dimension_numbers<[1], [0], [0], [1], [0, 0, 1, 1], [], []>} : vector<64x32xf32>, vector<32x32xf32>, vector<64x32xf32> -> vector<64x32xf32>
    %c0_45 = arith.constant 0 : index
    %c0_46 = arith.constant 0 : index
    %178 = vector.load %arg8[%c0_45, %c0_46] : memref<1x32xf32, #tpu.memory_space<vmem>>, vector<1x32xf32>
    %179 = vector.broadcast %178 : vector<1x32xf32> to vector<64x32xf32>
    %180 = arith.addf %177, %179 : vector<64x32xf32>
    %181 = vector.broadcast %2 : vector<64x1xi32> to vector<64x32xi32>
    %182 = arith.cmpi eq, %181, %13 : vector<64x32xi32>
    %183 = arith.extui %182 : vector<64x32xi1> to vector<64x32xi32>
    %184 = arith.sitofp %183 : vector<64x32xi32> to vector<64x32xf32>
    %cst_47 = arith.constant dense<0xFF800000> : vector<64xf32>
    %185 = vector.multi_reduction <maximumf>, %180, %cst_47 [1] : vector<64x32xf32> to vector<64xf32>
    %186 = vector.shape_cast %185 : vector<64xf32> to vector<64x1xf32>
    %187 = vector.broadcast %186 : vector<64x1xf32> to vector<64x32xf32>
    %188 = arith.subf %180, %187 : vector<64x32xf32>
    %189 = math.exp %188 : vector<64x32xf32>
    %cst_48 = arith.constant dense<0.000000e+00> : vector<64xf32>
    %190 = vector.multi_reduction <add>, %189, %cst_48 [1] : vector<64x32xf32> to vector<64xf32>
    %191 = vector.shape_cast %190 : vector<64xf32> to vector<64x1xf32>
    %192 = math.log %191 : vector<64x1xf32>
    %193 = arith.addf %192, %186 : vector<64x1xf32>
    %194 = arith.mulf %180, %184 : vector<64x32xf32>
    %cst_49 = arith.constant dense<0.000000e+00> : vector<64xf32>
    %195 = vector.multi_reduction <add>, %194, %cst_49 [1] : vector<64x32xf32> to vector<64xf32>
    %196 = vector.shape_cast %195 : vector<64xf32> to vector<64x1xf32>
    %c0_i32_50 = arith.constant 0 : i32
    %197 = vector.broadcast %c0_i32_50 : i32 to vector<64x1xi32>
    %198 = arith.cmpi ne, %2, %197 : vector<64x1xi32>
    %199 = arith.extui %198 : vector<64x1xi1> to vector<64x1xi32>
    %200 = arith.sitofp %199 : vector<64x1xi32> to vector<64x1xf32>
    %201 = arith.subf %193, %196 : vector<64x1xf32>
    %202 = arith.mulf %201, %200 : vector<64x1xf32>
    %cst_51 = arith.constant dense<0.000000e+00> : vector<1xf32>
    %203 = vector.multi_reduction <add>, %202, %cst_51 [0] : vector<64x1xf32> to vector<1xf32>
    %204 = vector.shape_cast %203 : vector<1xf32> to vector<1x1xf32>
    %cst_52 = arith.constant dense<0.000000e+00> : vector<1xf32>
    %205 = vector.multi_reduction <add>, %200, %cst_52 [0] : vector<64x1xf32> to vector<1xf32>
    %206 = vector.shape_cast %205 : vector<1xf32> to vector<1x1xf32>
    %cst_53 = arith.constant 1.000000e+00 : f32
    %207 = vector.broadcast %cst_53 : f32 to vector<1x1xf32>
    %208 = arith.maximumf %206, %207 : vector<1x1xf32>
    %209 = arith.divf %204, %208 : vector<1x1xf32>
    %c0_54 = arith.constant 0 : index
    %c0_55 = arith.constant 0 : index
    %210 = vector.load %arg9[%c0_54, %c0_55] : memref<1x1xf32, #tpu.memory_space<vmem>>, vector<1x1xf32>
    tpu.vector_store %arg9[%c0_54, %c0_55], %209 {strides = array<i32>} : memref<1x1xf32, #tpu.memory_space<vmem>>, vector<1x1xf32>,
    return
  }
}

</mosaic_0001>

<llo_original>
// kernel: lang_lang_reconstruct_loss.1
$region0: #{lang_lang_reconstruct_loss.1}
  #allocation0 [shape = 'u32[]', space=smem, size = 0x4, offset = 0x4, fixed_abs, tag = 'smem constant byte address 0x4 - core index']
  #allocation1 [shape = 'u32[144,128]{1,0:T(1,128)}', space=vmem, size = 0x12000, scoped, tag = 'internal scratch']
  #allocation2 [shape = 'f32[64,32]{1,0:T(8,128)}', space=vmem, size = 0x8000, scoped, tag = 'scratch operand']
  %s0 = inlined_call_operand.vmem [shape: f32[8,96], index: 0, kind: input, shape index: {}]
  %s1 = inlined_call_operand.vmem [shape: s32[64,2], index: 1, kind: input, shape index: {}]
  %s2 = inlined_call_operand.vmem [shape: f32[96,32], index: 2, kind: input, shape index: {}]
  %s3 = inlined_call_operand.vmem [shape: f32[1,32], index: 3, kind: input, shape index: {}]
  %s4 = inlined_call_operand.vmem [shape: f32[32,128], index: 4, kind: input, shape index: {}]
  %s5 = inlined_call_operand.vmem [shape: f32[32,128], index: 5, kind: input, shape index: {}]
  %s6 = inlined_call_operand.vmem [shape: f32[32,128], index: 6, kind: input, shape index: {}]
  %s7 = inlined_call_operand.vmem [shape: f32[32,32], index: 7, kind: input, shape index: {}]
  %s8 = inlined_call_operand.vmem [shape: f32[1,32], index: 8, kind: input, shape index: {}]
  %s9 = inlined_call_operand.hbm [shape: f32[1,1], index: 9, kind: output, shape index: {}]
  %s10 = sld [smem:[#allocation0]]
  $region46: #{lang_lang_reconstruct_loss.1} parent=0
    _
  %s12 = ssub.s32 1, %s10
  %s13 = scalar_select 0, %s12, %s10
  $region1: #{lang_lang_reconstruct_loss.1} parent=0
    #allocation3 [shape = 'u8[512]{0}', space=vmem, size = 0x400, scoped, tag = 'output window, operand 0, single buffered']
    #allocation4 [shape = 's32[1]{0}', space=sflag, size = 0x4, scoped, tag = 'scoped memory for lang_lang_reconstruct_loss.1']
    %14 = vsyncpa [#allocation4], 0
    // Predicated region
    $region2: #{lang_lang_reconstruct_loss.1} parent=1 // pred_check
      _
    $region3: #{lang_lang_reconstruct_loss.1} parent=1 // pred_check_branch
      %16 = sbr.rel (0) target = $region5
    $region4: #{lang_lang_reconstruct_loss.1} parent=1 // pred_region
      _
    $region5: #{lang_lang_reconstruct_loss.1} parent=1 // pred_fallthru
      _
    // Predicated region
    $region6: #{lang_lang_reconstruct_loss.1} parent=1 // pred_check
      _
    $region7: #{lang_lang_reconstruct_loss.1} parent=1 // pred_check_branch
      %18 = sbr.rel (0) target = $region9
    $region8: #{lang_lang_reconstruct_loss.1} parent=1 // pred_region
      _
    $region9: #{lang_lang_reconstruct_loss.1} parent=1 // pred_fallthru
      _
    // Predicated region
    $region10: #{lang_lang_reconstruct_loss.1} parent=1 // pred_check
      _
    $region11: #{lang_lang_reconstruct_loss.1} parent=1 // pred_check_branch
      %20 = sbr.rel (0) target = $region13
    $region12: #{lang_lang_reconstruct_loss.1} parent=1 // pred_region
      _
    $region13: #{lang_lang_reconstruct_loss.1} parent=1 // pred_fallthru
      _
    // Predicated region
    $region14: #{lang_lang_reconstruct_loss.1} parent=1 // pred_check
      _
    $region15: #{lang_lang_reconstruct_loss.1} parent=1 // pred_check_branch
      %22 = sbr.rel (0) target = $region17
    $region16: #{lang_lang_reconstruct_loss.1} parent=1 // pred_region
      _
    $region17: #{lang_lang_reconstruct_loss.1} parent=1 // pred_fallthru
      _
    // Predicated region
    $region18: #{lang_lang_reconstruct_loss.1} parent=1 // pred_check
      _
    $region19: #{lang_lang_reconstruct_loss.1} parent=1 // pred_check_branch
      %24 = sbr.rel (0) target = $region21
    $region20: #{lang_lang_reconstruct_loss.1} parent=1 // pred_region
      _
    $region21: #{lang_lang_reconstruct_loss.1} parent=1 // pred_fallthru
      _
    // Predicated region
    $region22: #{lang_lang_reconstruct_loss.1} parent=1 // pred_check
      _
    $region23: #{lang_lang_reconstruct_loss.1} parent=1 // pred_check_branch
      %26 = sbr.rel (0) target = $region25
    $region24: #{lang_lang_reconstruct_loss.1} parent=1 // pred_region
      _
    $region25: #{lang_lang_reconstruct_loss.1} parent=1 // pred_fallthru
      _
    // Predicated region
    $region26: #{lang_lang_reconstruct_loss.1} parent=1 // pred_check
      _
    $region27: #{lang_lang_reconstruct_loss.1} parent=1 // pred_check_branch
      %28 = sbr.rel (0) target = $region29
    $region28: #{lang_lang_reconstruct_loss.1} parent=1 // pred_region
      _
    $region29: #{lang_lang_reconstruct_loss.1} parent=1 // pred_fallthru
      _
    // Predicated region
    $region30: #{lang_lang_reconstruct_loss.1} parent=1 // pred_check
      _
    $region31: #{lang_lang_reconstruct_loss.1} parent=1 // pred_check_branch
      %30 = sbr.rel (0) target = $region33
    $region32: #{lang_lang_reconstruct_loss.1} parent=1 // pred_region
      _
    $region33: #{lang_lang_reconstruct_loss.1} parent=1 // pred_fallthru
      _
    // Predicated region
    $region34: #{lang_lang_reconstruct_loss.1} parent=1 // pred_check
      _
    $region35: #{lang_lang_reconstruct_loss.1} parent=1 // pred_check_branch
      %32 = sbr.rel (0) target = $region37
    $region36: #{lang_lang_reconstruct_loss.1} parent=1 // pred_region
      _
    $region37: #{lang_lang_reconstruct_loss.1} parent=1 // pred_fallthru
      _
    %v33 = vld [vmem:[%s1] sm:$0xff]
    %v34 = vld [vmem:[%s1 + $0x8] sm:$0xff]
    %v35 = vld [vmem:[%s1 + $0x10] sm:$0xff]
    %v36 = vld [vmem:[%s1 + $0x18] sm:$0xff]
    %v37 = vld [vmem:[%s1 + $0x20] sm:$0xff]
    %v38 = vld [vmem:[%s1 + $0x28] sm:$0xff]
    %v39 = vld [vmem:[%s1 + $0x30] sm:$0xff]
    %v40 = vld [vmem:[%s1 + $0x38] sm:$0xff]
    %v41 = vld [vmem:[%s0] sm:$0xff]
    %v42 = vld [vmem:[%s2] sm:$0xff]
    %v43 = vld [vmem:[%s2 + $0x8] sm:$0xff]
    %v44 = vld [vmem:[%s2 + $0x10] sm:$0xff]
    %v45 = vld [vmem:[%s2 + $0x18] sm:$0xff]
    %v46 = vld [vmem:[%s2 + $0x20] sm:$0xff]
    %v47 = vld [vmem:[%s2 + $0x28] sm:$0xff]
    %v48 = vld [vmem:[%s2 + $0x30] sm:$0xff]
    %v49 = vld [vmem:[%s2 + $0x38] sm:$0xff]
    %v50 = vld [vmem:[%s2 + $0x40] sm:$0xff]
    %v51 = vld [vmem:[%s2 + $0x48] sm:$0xff]
    %v52 = vld [vmem:[%s2 + $0x50] sm:$0xff]
    %v53 = vld [vmem:[%s2 + $0x58] sm:$0xff]
    %v54 = vld [vmem:[%s3] sm:$0x1]
    %v56 = vlaneseq
    %v57 = vshrl.u32 %v56, 7
    %v58 = vsub.s32 0, %v57
    %v59 = vrot.slane %v54, %v58
    %vm61 = vcmask 785408
    %v63 = vsel %vm61, %v41, 0
    %65 = vmatprep.subr.mxu0 0.0
    %66 = vmatpush1.msra.mxu0 0.0
    %67 = vmatprep.subr.mxu0 0.0
    %68 = vmatpush1.msra.mxu0 0.0
    %69 = vmatprep.subr.mxu0 0.0
    %70 = vmatpush1.msra.mxu0 0.0
    %71 = vmatprep.subr.mxu0 0.0
    %72 = vmatpush1.msra.mxu0 0.0
    %73 = vmatprep.subr.mxu0 0.0
    %74 = vmatpush1.msra.mxu0 %v53
    %75 = vmatprep.subr.mxu0 0.0
    %76 = vmatpush1.msra.mxu0 %v52
    %77 = vmatprep.subr.mxu0 0.0
    %78 = vmatpush1.msra.mxu0 %v51
    %79 = vmatprep.subr.mxu0 0.0
    %80 = vmatpush1.msra.mxu0 %v50
    %81 = vmatprep.subr.mxu0 0.0
    %82 = vmatpush1.msra.mxu0 %v49
    %83 = vmatprep.subr.mxu0 0.0
    %84 = vmatpush1.msra.mxu0 %v48
    %85 = vmatprep.subr.mxu0 0.0
    %86 = vmatpush1.msra.mxu0 %v47
    %87 = vmatprep.subr.mxu0 0.0
    %88 = vmatpush1.msra.mxu0 %v46
    %89 = vmatprep.subr.mxu0 0.0
    %90 = vmatpush1.msra.mxu0 %v45
    %91 = vmatprep.subr.mxu0 0.0
    %92 = vmatpush1.msra.mxu0 %v44
    %93 = vmatprep.subr.mxu0 0.0
    %94 = vmatpush1.msra.mxu0 %v43
    %95 = vmatprep.subr.mxu0 0.0
    %96 = vmatpush1.msra.mxu0 %v42
    %97 = vmatprep.subr.mxu0 0.0
    %98 = vmatpush2.msra.mxu0 0.0
    %99 = vmatprep.subr.mxu0 0.0
    %100 = vmatpush2.msra.mxu0 0.0
    %101 = vmatprep.subr.mxu0 0.0
    %102 = vmatpush2.msra.mxu0 0.0
    %103 = vmatprep.subr.mxu0 0.0
    %104 = vmatpush2.msra.mxu0 0.0
    %105 = vmatprep.subr.mxu0 0.0
    %106 = vmatpush2.msra.mxu0 0.0
    %107 = vmatprep.subr.mxu0 0.0
    %108 = vmatpush2.msra.mxu0 0.0
    %109 = vmatprep.subr.mxu0 0.0
    %110 = vmatpush2.msra.mxu0 0.0
    %111 = vmatprep.subr.mxu0 0.0
    %112 = vmatpush2.msra.mxu0 0.0
    %113 = vmatprep.subr.mxu0 0.0
    %114 = vmatpush2.msra.mxu0 0.0
    %115 = vmatprep.subr.mxu0 0.0
    %116 = vmatpush2.msra.mxu0 0.0
    %117 = vmatprep.subr.mxu0 0.0
    %118 = vmatpush2.msra.mxu0 0.0
    %119 = vmatprep.subr.mxu0 0.0
    %120 = vmatpush2.msra.mxu0 0.0
    %121 = vmatprep.subr.mxu0 0.0
    %122 = vmatpush2.msra.mxu0 0.0
    %123 = vmatprep.subr.mxu0 0.0
    %124 = vmatpush2.msra.mxu0 0.0
    %125 = vmatprep.subr.mxu0 0.0
    %126 = vmatpush2.msra.mxu0 0.0
    %127 = vmatprep.subr.mxu0 0.0
    %128 = vmatpush2.msra.mxu0 0.0
    %129 = vmatprep.mubr.f32.mxu0 0.0
    %130 = vmatmul.mubr.f32.gmra.mxu0 %v63
    %v131 = vpop.f32.mrf.mxu0
    %v132 = vadd.f32 %v59, %v131
    %v133 = vpop.f32.mrf.mxu0
    %134 = vdwg.mxu0
    %v135 = vmax.f32 %v132, 0.0
    %v136 = vld [vmem:[%s5] sm:$0xff]
    %v137 = vld [vmem:[%s5 + $0x8] sm:$0xff]
    %v138 = vld [vmem:[%s5 + $0x10] sm:$0xff]
    %v139 = vld [vmem:[%s5 + $0x18] sm:$0xff]
    %vm140 = vcmask 261120
    %v142 = vsel %vm140, %v135, 0
    %144 = vmatprep.subr.mxu0 0.0
    %145 = vmatpush1.msra.mxu0 0.0
    %146 = vmatprep.subr.mxu0 0.0
    %147 = vmatpush1.msra.mxu0 0.0
    %148 = vmatprep.subr.mxu0 0.0
    %149 = vmatpush1.msra.mxu0 0.0
    %150 = vmatprep.subr.mxu0 0.0
    %151 = vmatpush1.msra.mxu0 0.0
    %152 = vmatprep.subr.mxu0 0.0
    %153 = vmatpush1.msra.mxu0 0.0
    %154 = vmatprep.subr.mxu0 0.0
    %155 = vmatpush1.msra.mxu0 0.0
    %156 = vmatprep.subr.mxu0 0.0
    %157 = vmatpush1.msra.mxu0 0.0
    %158 = vmatprep.subr.mxu0 0.0
    %159 = vmatpush1.msra.mxu0 0.0
    %160 = vmatprep.subr.mxu0 0.0
    %161 = vmatpush1.msra.mxu0 0.0
    %162 = vmatprep.subr.mxu0 0.0
    %163 = vmatpush1.msra.mxu0 0.0
    %164 = vmatprep.subr.mxu0 0.0
    %165 = vmatpush1.msra.mxu0 0.0
    %166 = vmatprep.subr.mxu0 0.0
    %167 = vmatpush1.msra.mxu0 0.0
    %168 = vmatprep.subr.mxu0 0.0
    %169 = vmatpush1.msra.mxu0 %v139
    %170 = vmatprep.subr.mxu0 0.0
    %171 = vmatpush1.msra.mxu0 %v138
    %172 = vmatprep.subr.mxu0 0.0
    %173 = vmatpush1.msra.mxu0 %v137
    %174 = vmatprep.subr.mxu0 0.0
    %175 = vmatpush1.msra.mxu0 %v136
    %176 = vmatprep.subr.mxu0 0.0
    %177 = vmatpush2.msra.mxu0 0.0
    %178 = vmatprep.subr.mxu0 0.0
    %179 = vmatpush2.msra.mxu0 0.0
    %180 = vmatprep.subr.mxu0 0.0
    %181 = vmatpush2.msra.mxu0 0.0
    %182 = vmatprep.subr.mxu0 0.0
    %183 = vmatpush2.msra.mxu0 0.0
    %184 = vmatprep.subr.mxu0 0.0
    %185 = vmatpush2.msra.mxu0 0.0
    %186 = vmatprep.subr.mxu0 0.0
    %187 = vmatpush2.msra.mxu0 0.0
    %188 = vmatprep.subr.mxu0 0.0
    %189 = vmatpush2.msra.mxu0 0.0
    %190 = vmatprep.subr.mxu0 0.0
    %191 = vmatpush2.msra.mxu0 0.0
    %192 = vmatprep.subr.mxu0 0.0
    %193 = vmatpush2.msra.mxu0 0.0
    %194 = vmatprep.subr.mxu0 0.0
    %195 = vmatpush2.msra.mxu0 0.0
    %196 = vmatprep.subr.mxu0 0.0
    %197 = vmatpush2.msra.mxu0 0.0
    %198 = vmatprep.subr.mxu0 0.0
    %199 = vmatpush2.msra.mxu0 0.0
    %200 = vmatprep.subr.mxu0 0.0
    %201 = vmatpush2.msra.mxu0 0.0
    %202 = vmatprep.subr.mxu0 0.0
    %203 = vmatpush2.msra.mxu0 0.0
    %204 = vmatprep.subr.mxu0 0.0
    %205 = vmatpush2.msra.mxu0 0.0
    %206 = vmatprep.subr.mxu0 0.0
    %207 = vmatpush2.msra.mxu0 0.0
    %208 = vmatprep.mubr.f32.mxu0 0.0
    %209 = vmatmul.mubr.f32.gmra.mxu0 %v142
    %v210 = vpop.f32.mrf.mxu0
    %v211 = vadd.f32 0.0, %v210
    %v212 = vpop.f32.mrf.mxu0
    %213 = vdwg.mxu0
    %v214 = vlaneseq
    %v215 = vand.u32 %v214, 127
    %216 = vset.pattern.permute.xlu0 0
    %217 = vperm.xlu0 %216, %v33
    %v218 = vpop.permute.xlu0 %217
    %219 = vset.pattern.permute.xlu0 0
    %220 = vperm.xlu0 %219, %v34
    %v221 = vpop.permute.xlu0 %220
    %222 = vset.pattern.permute.xlu0 0
    %223 = vperm.xlu0 %222, %v35
    %v224 = vpop.permute.xlu0 %223
    %225 = vset.pattern.permute.xlu0 0
    %226 = vperm.xlu0 %225, %v36
    %v227 = vpop.permute.xlu0 %226
    %228 = vset.pattern.permute.xlu0 0
    %229 = vperm.xlu0 %228, %v37
    %v230 = vpop.permute.xlu0 %229
    %231 = vset.pattern.permute.xlu0 0
    %232 = vperm.xlu0 %231, %v38
    %v233 = vpop.permute.xlu0 %232
    %234 = vset.pattern.permute.xlu0 0
    %235 = vperm.xlu0 %234, %v39
    %v236 = vpop.permute.xlu0 %235
    %237 = vset.pattern.permute.xlu0 0
    %238 = vperm.xlu0 %237, %v40
    %v239 = vpop.permute.xlu0 %238
    %vm240 = vcmp.eq.s32.totalorder %v218, %v215
    %vm241 = vcmp.eq.s32.totalorder %v221, %v215
    %vm242 = vcmp.eq.s32.totalorder %v224, %v215
    %vm243 = vcmp.eq.s32.totalorder %v227, %v215
    %vm244 = vcmp.eq.s32.totalorder %v230, %v215
    %vm245 = vcmp.eq.s32.totalorder %v233, %v215
    %vm246 = vcmp.eq.s32.totalorder %v236, %v215
    %vm247 = vcmp.eq.s32.totalorder %v239, %v215
    %v248 = vsel %vm240, 1, 0
    %v249 = vsel %vm241, 1, 0
    %v250 = vsel %vm242, 1, 0
    %v251 = vsel %vm243, 1, 0
    %v252 = vsel %vm244, 1, 0
    %v253 = vsel %vm245, 1, 0
    %v254 = vsel %vm246, 1, 0
    %v255 = vsel %vm247, 1, 0
    %v256 = vcvt.s32.f32 %v248
    %v257 = vcvt.s32.f32 %v249
    %v258 = vcvt.s32.f32 %v250
    %v259 = vcvt.s32.f32 %v251
    %v260 = vcvt.s32.f32 %v252
    %v261 = vcvt.s32.f32 %v253
    %v262 = vcvt.s32.f32 %v254
    %v263 = vcvt.s32.f32 %v255
    %v264 = vld [vmem:[%s4] sm:$0xff]
    %v265 = vld [vmem:[%s4 + $0x8] sm:$0xff]
    %v266 = vld [vmem:[%s4 + $0x10] sm:$0xff]
    %v267 = vld [vmem:[%s4 + $0x18] sm:$0xff]
    %v269 = vsel %vm140, %v256, 0
    %v272 = vsel %vm140, %v257, 0
    %v275 = vsel %vm140, %v258, 0
    %v278 = vsel %vm140, %v259, 0
    %v281 = vsel %vm140, %v260, 0
    %v284 = vsel %vm140, %v261, 0
    %v287 = vsel %vm140, %v262, 0
    %v290 = vsel %vm140, %v263, 0
    %292 = vmatprep.subr.mxu0 0.0
    %293 = vmatpush1.msra.mxu0 0.0
    %294 = vmatprep.subr.mxu0 0.0
    %295 = vmatpush1.msra.mxu0 0.0
    %296 = vmatprep.subr.mxu0 0.0
    %297 = vmatpush1.msra.mxu0 0.0
    %298 = vmatprep.subr.mxu0 0.0
    %299 = vmatpush1.msra.mxu0 0.0
    %300 = vmatprep.subr.mxu0 0.0
    %301 = vmatpush1.msra.mxu0 0.0
    %302 = vmatprep.subr.mxu0 0.0
    %303 = vmatpush1.msra.mxu0 0.0
    %304 = vmatprep.subr.mxu0 0.0
    %305 = vmatpush1.msra.mxu0 0.0
    %306 = vmatprep.subr.mxu0 0.0
    %307 = vmatpush1.msra.mxu0 0.0
    %308 = vmatprep.subr.mxu0 0.0
    %309 = vmatpush1.msra.mxu0 0.0
    %310 = vmatprep.subr.mxu0 0.0
    %311 = vmatpush1.msra.mxu0 0.0
    %312 = vmatprep.subr.mxu0 0.0
    %313 = vmatpush1.msra.mxu0 0.0
    %314 = vmatprep.subr.mxu0 0.0
    %315 = vmatpush1.msra.mxu0 0.0
    %316 = vmatprep.subr.mxu0 0.0
    %317 = vmatpush1.msra.mxu0 %v267
    %318 = vmatprep.subr.mxu0 0.0
    %319 = vmatpush1.msra.mxu0 %v266
    %320 = vmatprep.subr.mxu0 0.0
    %321 = vmatpush1.msra.mxu0 %v265
    %322 = vmatprep.subr.mxu0 0.0
    %323 = vmatpush1.msra.mxu0 %v264
    %324 = vmatprep.subr.mxu0 0.0
    %325 = vmatpush2.msra.mxu0 0.0
    %326 = vmatprep.subr.mxu0 0.0
    %327 = vmatpush2.msra.mxu0 0.0
    %328 = vmatprep.subr.mxu0 0.0
    %329 = vmatpush2.msra.mxu0 0.0
    %330 = vmatprep.subr.mxu0 0.0
    %331 = vmatpush2.msra.mxu0 0.0
    %332 = vmatprep.subr.mxu0 0.0
    %333 = vmatpush2.msra.mxu0 0.0
    %334 = vmatprep.subr.mxu0 0.0
    %335 = vmatpush2.msra.mxu0 0.0
    %336 = vmatprep.subr.mxu0 0.0
    %337 = vmatpush2.msra.mxu0 0.0
    %338 = vmatprep.subr.mxu0 0.0
    %339 = vmatpush2.msra.mxu0 0.0
    %340 = vmatprep.subr.mxu0 0.0
    %341 = vmatpush2.msra.mxu0 0.0
    %342 = vmatprep.subr.mxu0 0.0
    %343 = vmatpush2.msra.mxu0 0.0
    %344 = vmatprep.subr.mxu0 0.0
    %345 = vmatpush2.msra.mxu0 0.0
    %346 = vmatprep.subr.mxu0 0.0
    %347 = vmatpush2.msra.mxu0 0.0
    %348 = vmatprep.subr.mxu0 0.0
    %349 = vmatpush2.msra.mxu0 0.0
    %350 = vmatprep.subr.mxu0 0.0
    %351 = vmatpush2.msra.mxu0 0.0
    %352 = vmatprep.subr.mxu0 0.0
    %353 = vmatpush2.msra.mxu0 0.0
    %354 = vmatprep.subr.mxu0 0.0
    %355 = vmatpush2.msra.mxu0 0.0
    %356 = vmatprep.mubr.f32.mxu0 0.0
    %357 = vmatmul.mubr.f32.gmra.mxu0 %v269
    %v358 = vpop.f32.mrf.mxu0
    %v359 = vadd.f32 0.0, %v358
    %v360 = vpop.f32.mrf.mxu0
    %361 = vmatprep.mubr.f32.mxu0 0.0
    %362 = vmatmul.mubr.f32.gmra.mxu0 %v272
    %v363 = vpop.f32.mrf.mxu0
    %v364 = vadd.f32 0.0, %v363
    %v365 = vpop.f32.mrf.mxu0
    %366 = vmatprep.mubr.f32.mxu0 0.0
    %367 = vmatmul.mubr.f32.gmra.mxu0 %v275
    %v368 = vpop.f32.mrf.mxu0
    %v369 = vadd.f32 0.0, %v368
    %v370 = vpop.f32.mrf.mxu0
    %371 = vmatprep.mubr.f32.mxu0 0.0
    %372 = vmatmul.mubr.f32.gmra.mxu0 %v278
    %v373 = vpop.f32.mrf.mxu0
    %v374 = vadd.f32 0.0, %v373
    %v375 = vpop.f32.mrf.mxu0
    %376 = vmatprep.mubr.f32.mxu0 0.0
    %377 = vmatmul.mubr.f32.gmra.mxu0 %v281
    %v378 = vpop.f32.mrf.mxu0
    %v379 = vadd.f32 0.0, %v378
    %v380 = vpop.f32.mrf.mxu0
    %381 = vmatprep.mubr.f32.mxu0 0.0
    %382 = vmatmul.mubr.f32.gmra.mxu0 %v284
    %v383 = vpop.f32.mrf.mxu0
    %v384 = vadd.f32 0.0, %v383
    %v385 = vpop.f32.mrf.mxu0
    %386 = vmatprep.mubr.f32.mxu0 0.0
    %387 = vmatmul.mubr.f32.gmra.mxu0 %v287
    %v388 = vpop.f32.mrf.mxu0
    %v389 = vadd.f32 0.0, %v388
    %v390 = vpop.f32.mrf.mxu0
    %391 = vmatprep.mubr.f32.mxu0 0.0
    %392 = vmatmul.mubr.f32.gmra.mxu0 %v290
    %v393 = vpop.f32.mrf.mxu0
    %v394 = vadd.f32 0.0, %v393
    %v395 = vpop.f32.mrf.mxu0
    %396 = vdwg.mxu0
    %v397 = vld [vmem:[%s6] sm:$0xff]
    %v398 = vld [vmem:[%s6 + $0x8] sm:$0xff]
    %v399 = vld [vmem:[%s6 + $0x10] sm:$0xff]
    %v400 = vld [vmem:[%s6 + $0x18] sm:$0xff]
    %v401 = vadd.f32 %v359, %v211
    %v402 = vxor.u32 %v401, 2147483648
    %v403 = vmul.f32 %v402, 1.442695
    %v404 = vpow.pop %v403
    %v405 = vadd.f32 %v404, 1.0
    %v406 = vrcp.pop %v405
    %v407 = vmul.f32 1.0, %v406
    %v408 = vtanh.pop %v401
    %410 = vrot.lane.b32.xlu0 %v408, 64
    %v411 = vpop.permute.xlu0 %410
    %v413 = vmul.f32 %v407, %v411
    %v414 = vtanh.pop %v413
    %416 = vrot.lane.b32.xlu0 %v414, 96
    %v417 = vpop.permute.xlu0 %416
    %v419 = vmul.f32 %v407, %v417
    %421 = vrot.lane.b32.xlu0 %v419, 32
    %v422 = vpop.permute.xlu0 %421
    %424 = vst.msk [vmem:[#allocation2] sm:$0xff] %vm140, %v422
    %v425 = vsel %vm140, %v422, 0
    %427 = vmatprep.subr.mxu0 0.0
    %428 = vmatpush1.msra.mxu0 0.0
    %429 = vmatprep.subr.mxu0 0.0
    %430 = vmatpush1.msra.mxu0 0.0
    %431 = vmatprep.subr.mxu0 0.0
    %432 = vmatpush1.msra.mxu0 0.0
    %433 = vmatprep.subr.mxu0 0.0
    %434 = vmatpush1.msra.mxu0 0.0
    %435 = vmatprep.subr.mxu0 0.0
    %436 = vmatpush1.msra.mxu0 0.0
    %437 = vmatprep.subr.mxu0 0.0
    %438 = vmatpush1.msra.mxu0 0.0
    %439 = vmatprep.subr.mxu0 0.0
    %440 = vmatpush1.msra.mxu0 0.0
    %441 = vmatprep.subr.mxu0 0.0
    %442 = vmatpush1.msra.mxu0 0.0
    %443 = vmatprep.subr.mxu0 0.0
    %444 = vmatpush1.msra.mxu0 0.0
    %445 = vmatprep.subr.mxu0 0.0
    %446 = vmatpush1.msra.mxu0 0.0
    %447 = vmatprep.subr.mxu0 0.0
    %448 = vmatpush1.msra.mxu0 0.0
    %449 = vmatprep.subr.mxu0 0.0
    %450 = vmatpush1.msra.mxu0 0.0
    %451 = vmatprep.subr.mxu0 0.0
    %452 = vmatpush1.msra.mxu0 %v400
    %453 = vmatprep.subr.mxu0 0.0
    %454 = vmatpush1.msra.mxu0 %v399
    %455 = vmatprep.subr.mxu0 0.0
    %456 = vmatpush1.msra.mxu0 %v398
    %457 = vmatprep.subr.mxu0 0.0
    %458 = vmatpush1.msra.mxu0 %v397
    %459 = vmatprep.subr.mxu0 0.0
    %460 = vmatpush2.msra.mxu0 0.0
    %461 = vmatprep.subr.mxu0 0.0
    %462 = vmatpush2.msra.mxu0 0.0
    %463 = vmatprep.subr.mxu0 0.0
    %464 = vmatpush2.msra.mxu0 0.0
    %465 = vmatprep.subr.mxu0 0.0
    %466 = vmatpush2.msra.mxu0 0.0
    %467 = vmatprep.subr.mxu0 0.0
    %468 = vmatpush2.msra.mxu0 0.0
    %469 = vmatprep.subr.mxu0 0.0
    %470 = vmatpush2.msra.mxu0 0.0
    %471 = vmatprep.subr.mxu0 0.0
    %472 = vmatpush2.msra.mxu0 0.0
    %473 = vmatprep.subr.mxu0 0.0
    %474 = vmatpush2.msra.mxu0 0.0
    %475 = vmatprep.subr.mxu0 0.0
    %476 = vmatpush2.msra.mxu0 0.0
    %477 = vmatprep.subr.mxu0 0.0
    %478 = vmatpush2.msra.mxu0 0.0
    %479 = vmatprep.subr.mxu0 0.0
    %480 = vmatpush2.msra.mxu0 0.0
    %481 = vmatprep.subr.mxu0 0.0
    %482 = vmatpush2.msra.mxu0 0.0
    %483 = vmatprep.subr.mxu0 0.0
    %484 = vmatpush2.msra.mxu0 0.0
    %485 = vmatprep.subr.mxu0 0.0
    %486 = vmatpush2.msra.mxu0 0.0
    %487 = vmatprep.subr.mxu0 0.0
    %488 = vmatpush2.msra.mxu0 0.0
    %489 = vmatprep.subr.mxu0 0.0
    %490 = vmatpush2.msra.mxu0 0.0
    %491 = vmatprep.mubr.f32.mxu0 0.0
    %492 = vmatmul.mubr.f32.gmra.mxu0 %v425
    %v493 = vpop.f32.mrf.mxu0
    %v494 = vadd.f32 0.0, %v493
    %v495 = vpop.f32.mrf.mxu0
    %496 = vdwg.mxu0
    %v497 = vadd.f32 %v364, %v494
    %v498 = vxor.u32 %v497, 2147483648
    %v499 = vmul.f32 %v498, 1.442695
    %v500 = vpow.pop %v499
    %v501 = vadd.f32 %v500, 1.0
    %v502 = vrcp.pop %v501
    %v503 = vmul.f32 1.0, %v502
    %v504 = vtanh.pop %v497
    %506 = vrot.lane.b32.xlu0 %v413, 32
    %v507 = vpop.permute.xlu0 %506
    %v509 = vmul.f32 %v503, %v507
    %511 = vrot.lane.b32.xlu0 %v504, 64
    %v512 = vpop.permute.xlu0 %511
    %v514 = vmul.f32 %v503, %v512
    %516 = vrot.lane.b32.xlu0 %v514, 32
    %v517 = vpop.permute.xlu0 %516
    %v519 = vadd.f32 %v509, %v517
    %v520 = vtanh.pop %v519
    %522 = vrot.lane.b32.xlu0 %v520, 64
    %v523 = vpop.permute.xlu0 %522
    %v525 = vmul.f32 %v503, %v523
    %527 = vrot.lane.b32.xlu0 %v525, 32
    %v528 = vpop.permute.xlu0 %527
    %530 = vst.msk [vmem:[#allocation2 + $0x8] sm:$0xff] %vm140, %v528
    %v531 = vsel %vm140, %v528, 0
    %533 = vmatprep.subr.mxu0 0.0
    %534 = vmatpush1.msra.mxu0 0.0
    %535 = vmatprep.subr.mxu0 0.0
    %536 = vmatpush1.msra.mxu0 0.0
    %537 = vmatprep.subr.mxu0 0.0
    %538 = vmatpush1.msra.mxu0 0.0
    %539 = vmatprep.subr.mxu0 0.0
    %540 = vmatpush1.msra.mxu0 0.0
    %541 = vmatprep.subr.mxu0 0.0
    %542 = vmatpush1.msra.mxu0 0.0
    %543 = vmatprep.subr.mxu0 0.0
    %544 = vmatpush1.msra.mxu0 0.0
    %545 = vmatprep.subr.mxu0 0.0
    %546 = vmatpush1.msra.mxu0 0.0
    %547 = vmatprep.subr.mxu0 0.0
    %548 = vmatpush1.msra.mxu0 0.0
    %549 = vmatprep.subr.mxu0 0.0
    %550 = vmatpush1.msra.mxu0 0.0
    %551 = vmatprep.subr.mxu0 0.0
    %552 = vmatpush1.msra.mxu0 0.0
    %553 = vmatprep.subr.mxu0 0.0
    %554 = vmatpush1.msra.mxu0 0.0
    %555 = vmatprep.subr.mxu0 0.0
    %556 = vmatpush1.msra.mxu0 0.0
    %557 = vmatprep.subr.mxu0 0.0
    %558 = vmatpush1.msra.mxu0 %v400
    %559 = vmatprep.subr.mxu0 0.0
    %560 = vmatpush1.msra.mxu0 %v399
    %561 = vmatprep.subr.mxu0 0.0
    %562 = vmatpush1.msra.mxu0 %v398
    %563 = vmatprep.subr.mxu0 0.0
    %564 = vmatpush1.msra.mxu0 %v397
    %565 = vmatprep.subr.mxu0 0.0
    %566 = vmatpush2.msra.mxu0 0.0
    %567 = vmatprep.subr.mxu0 0.0
    %568 = vmatpush2.msra.mxu0 0.0
    %569 = vmatprep.subr.mxu0 0.0
    %570 = vmatpush2.msra.mxu0 0.0
    %571 = vmatprep.subr.mxu0 0.0
    %572 = vmatpush2.msra.mxu0 0.0
    %573 = vmatprep.subr.mxu0 0.0
    %574 = vmatpush2.msra.mxu0 0.0
    %575 = vmatprep.subr.mxu0 0.0
    %576 = vmatpush2.msra.mxu0 0.0
    %577 = vmatprep.subr.mxu0 0.0
    %578 = vmatpush2.msra.mxu0 0.0
    %579 = vmatprep.subr.mxu0 0.0
    %580 = vmatpush2.msra.mxu0 0.0
    %581 = vmatprep.subr.mxu0 0.0
    %582 = vmatpush2.msra.mxu0 0.0
    %583 = vmatprep.subr.mxu0 0.0
    %584 = vmatpush2.msra.mxu0 0.0
    %585 = vmatprep.subr.mxu0 0.0
    %586 = vmatpush2.msra.mxu0 0.0
    %587 = vmatprep.subr.mxu0 0.0
    %588 = vmatpush2.msra.mxu0 0.0
    %589 = vmatprep.subr.mxu0 0.0
    %590 = vmatpush2.msra.mxu0 0.0
    %591 = vmatprep.subr.mxu0 0.0
    %592 = vmatpush2.msra.mxu0 0.0
    %593 = vmatprep.subr.mxu0 0.0
    %594 = vmatpush2.msra.mxu0 0.0
    %595 = vmatprep.subr.mxu0 0.0
    %596 = vmatpush2.msra.mxu0 0.0
    %597 = vmatprep.mubr.f32.mxu0 0.0
    %598 = vmatmul.mubr.f32.gmra.mxu0 %v531
    %v599 = vpop.f32.mrf.mxu0
    %v600 = vadd.f32 0.0, %v599
    %v601 = vpop.f32.mrf.mxu0
    %602 = vdwg.mxu0
    %v603 = vadd.f32 %v369, %v600
    %v604 = vxor.u32 %v603, 2147483648
    %v605 = vmul.f32 %v604, 1.442695
    %v606 = vpow.pop %v605
    %v607 = vadd.f32 %v606, 1.0
    %v608 = vrcp.pop %v607
    %v609 = vmul.f32 1.0, %v608
    %v610 = vtanh.pop %v603
    %v611 = vmul.f32 %v609, %v519
    %613 = vrot.lane.b32.xlu0 %v610, 64
    %v614 = vpop.permute.xlu0 %613
    %v616 = vmul.f32 %v609, %v614
    %618 = vrot.lane.b32.xlu0 %v616, 32
    %v619 = vpop.permute.xlu0 %618
    %v621 = vadd.f32 %v611, %v619
    %v622 = vtanh.pop %v621
    %624 = vrot.lane.b32.xlu0 %v622, 64
    %v625 = vpop.permute.xlu0 %624
    %v627 = vmul.f32 %v609, %v625
    %629 = vrot.lane.b32.xlu0 %v627, 32
    %v630 = vpop.permute.xlu0 %629
    %632 = vst.msk [vmem:[#allocation2 + $0x10] sm:$0xff] %vm140, %v630
    %v633 = vsel %vm140, %v630, 0
    %635 = vmatprep.subr.mxu0 0.0
    %636 = vmatpush1.msra.mxu0 0.0
    %637 = vmatprep.subr.mxu0 0.0
    %638 = vmatpush1.msra.mxu0 0.0
    %639 = vmatprep.subr.mxu0 0.0
    %640 = vmatpush1.msra.mxu0 0.0
    %641 = vmatprep.subr.mxu0 0.0
    %642 = vmatpush1.msra.mxu0 0.0
    %643 = vmatprep.subr.mxu0 0.0
    %644 = vmatpush1.msra.mxu0 0.0
    %645 = vmatprep.subr.mxu0 0.0
    %646 = vmatpush1.msra.mxu0 0.0
    %647 = vmatprep.subr.mxu0 0.0
    %648 = vmatpush1.msra.mxu0 0.0
    %649 = vmatprep.subr.mxu0 0.0
    %650 = vmatpush1.msra.mxu0 0.0
    %651 = vmatprep.subr.mxu0 0.0
    %652 = vmatpush1.msra.mxu0 0.0
    %653 = vmatprep.subr.mxu0 0.0
    %654 = vmatpush1.msra.mxu0 0.0
    %655 = vmatprep.subr.mxu0 0.0
    %656 = vmatpush1.msra.mxu0 0.0
    %657 = vmatprep.subr.mxu0 0.0
    %658 = vmatpush1.msra.mxu0 0.0
    %659 = vmatprep.subr.mxu0 0.0
    %660 = vmatpush1.msra.mxu0 %v400
    %661 = vmatprep.subr.mxu0 0.0
    %662 = vmatpush1.msra.mxu0 %v399
    %663 = vmatprep.subr.mxu0 0.0
    %664 = vmatpush1.msra.mxu0 %v398
    %665 = vmatprep.subr.mxu0 0.0
    %666 = vmatpush1.msra.mxu0 %v397
    %667 = vmatprep.subr.mxu0 0.0
    %668 = vmatpush2.msra.mxu0 0.0
    %669 = vmatprep.subr.mxu0 0.0
    %670 = vmatpush2.msra.mxu0 0.0
    %671 = vmatprep.subr.mxu0 0.0
    %672 = vmatpush2.msra.mxu0 0.0
    %673 = vmatprep.subr.mxu0 0.0
    %674 = vmatpush2.msra.mxu0 0.0
    %675 = vmatprep.subr.mxu0 0.0
    %676 = vmatpush2.msra.mxu0 0.0
    %677 = vmatprep.subr.mxu0 0.0
    %678 = vmatpush2.msra.mxu0 0.0
    %679 = vmatprep.subr.mxu0 0.0
    %680 = vmatpush2.msra.mxu0 0.0
    %681 = vmatprep.subr.mxu0 0.0
    %682 = vmatpush2.msra.mxu0 0.0
    %683 = vmatprep.subr.mxu0 0.0
    %684 = vmatpush2.msra.mxu0 0.0
    %685 = vmatprep.subr.mxu0 0.0
    %686 = vmatpush2.msra.mxu0 0.0
    %687 = vmatprep.subr.mxu0 0.0
    %688 = vmatpush2.msra.mxu0 0.0
    %689 = vmatprep.subr.mxu0 0.0
    %690 = vmatpush2.msra.mxu0 0.0
    %691 = vmatprep.subr.mxu0 0.0
    %692 = vmatpush2.msra.mxu0 0.0
    %693 = vmatprep.subr.mxu0 0.0
    %694 = vmatpush2.msra.mxu0 0.0
    %695 = vmatprep.subr.mxu0 0.0
    %696 = vmatpush2.msra.mxu0 0.0
    %697 = vmatprep.subr.mxu0 0.0
    %698 = vmatpush2.msra.mxu0 0.0
    %699 = vmatprep.mubr.f32.mxu0 0.0
    %700 = vmatmul.mubr.f32.gmra.mxu0 %v633
    %v701 = vpop.f32.mrf.mxu0
    %v702 = vadd.f32 0.0, %v701
    %v703 = vpop.f32.mrf.mxu0
    %704 = vdwg.mxu0
    %v705 = vadd.f32 %v374, %v702
    %v706 = vxor.u32 %v705, 2147483648
    %v707 = vmul.f32 %v706, 1.442695
    %v708 = vpow.pop %v707
    %v709 = vadd.f32 %v708, 1.0
    %v710 = vrcp.pop %v709
    %v711 = vmul.f32 1.0, %v710
    %v712 = vtanh.pop %v705
    %v713 = vmul.f32 %v711, %v621
    %715 = vrot.lane.b32.xlu0 %v712, 64
    %v716 = vpop.permute.xlu0 %715
    %v718 = vmul.f32 %v711, %v716
    %720 = vrot.lane.b32.xlu0 %v718, 32
    %v721 = vpop.permute.xlu0 %720
    %v723 = vadd.f32 %v713, %v721
    %v724 = vtanh.pop %v723
    %726 = vrot.lane.b32.xlu0 %v724, 64
    %v727 = vpop.permute.xlu0 %726
    %v729 = vmul.f32 %v711, %v727
    %731 = vrot.lane.b32.xlu0 %v729, 32
    %v732 = vpop.permute.xlu0 %731
    %734 = vst.msk [vmem:[#allocation2 + $0x18] sm:$0xff] %vm140, %v732
    %v735 = vsel %vm140, %v732, 0
    %737 = vmatprep.subr.mxu0 0.0
    %738 = vmatpush1.msra.mxu0 0.0
    %739 = vmatprep.subr.mxu0 0.0
    %740 = vmatpush1.msra.mxu0 0.0
    %741 = vmatprep.subr.mxu0 0.0
    %742 = vmatpush1.msra.mxu0 0.0
    %743 = vmatprep.subr.mxu0 0.0
    %744 = vmatpush1.msra.mxu0 0.0
    %745 = vmatprep.subr.mxu0 0.0
    %746 = vmatpush1.msra.mxu0 0.0
    %747 = vmatprep.subr.mxu0 0.0
    %748 = vmatpush1.msra.mxu0 0.0
    %749 = vmatprep.subr.mxu0 0.0
    %750 = vmatpush1.msra.mxu0 0.0
    %751 = vmatprep.subr.mxu0 0.0
    %752 = vmatpush1.msra.mxu0 0.0
    %753 = vmatprep.subr.mxu0 0.0
    %754 = vmatpush1.msra.mxu0 0.0
    %755 = vmatprep.subr.mxu0 0.0
    %756 = vmatpush1.msra.mxu0 0.0
    %757 = vmatprep.subr.mxu0 0.0
    %758 = vmatpush1.msra.mxu0 0.0
    %759 = vmatprep.subr.mxu0 0.0
    %760 = vmatpush1.msra.mxu0 0.0
    %761 = vmatprep.subr.mxu0 0.0
    %762 = vmatpush1.msra.mxu0 %v400
    %763 = vmatprep.subr.mxu0 0.0
    %764 = vmatpush1.msra.mxu0 %v399
    %765 = vmatprep.subr.mxu0 0.0
    %766 = vmatpush1.msra.mxu0 %v398
    %767 = vmatprep.subr.mxu0 0.0
    %768 = vmatpush1.msra.mxu0 %v397
    %769 = vmatprep.subr.mxu0 0.0
    %770 = vmatpush2.msra.mxu0 0.0
    %771 = vmatprep.subr.mxu0 0.0
    %772 = vmatpush2.msra.mxu0 0.0
    %773 = vmatprep.subr.mxu0 0.0
    %774 = vmatpush2.msra.mxu0 0.0
    %775 = vmatprep.subr.mxu0 0.0
    %776 = vmatpush2.msra.mxu0 0.0
    %777 = vmatprep.subr.mxu0 0.0
    %778 = vmatpush2.msra.mxu0 0.0
    %779 = vmatprep.subr.mxu0 0.0
    %780 = vmatpush2.msra.mxu0 0.0
    %781 = vmatprep.subr.mxu0 0.0
    %782 = vmatpush2.msra.mxu0 0.0
    %783 = vmatprep.subr.mxu0 0.0
    %784 = vmatpush2.msra.mxu0 0.0
    %785 = vmatprep.subr.mxu0 0.0
    %786 = vmatpush2.msra.mxu0 0.0
    %787 = vmatprep.subr.mxu0 0.0
    %788 = vmatpush2.msra.mxu0 0.0
    %789 = vmatprep.subr.mxu0 0.0
    %790 = vmatpush2.msra.mxu0 0.0
    %791 = vmatprep.subr.mxu0 0.0
    %792 = vmatpush2.msra.mxu0 0.0
    %793 = vmatprep.subr.mxu0 0.0
    %794 = vmatpush2.msra.mxu0 0.0
    %795 = vmatprep.subr.mxu0 0.0
    %796 = vmatpush2.msra.mxu0 0.0
    %797 = vmatprep.subr.mxu0 0.0
    %798 = vmatpush2.msra.mxu0 0.0
    %799 = vmatprep.subr.mxu0 0.0
    %800 = vmatpush2.msra.mxu0 0.0
    %801 = vmatprep.mubr.f32.mxu0 0.0
    %802 = vmatmul.mubr.f32.gmra.mxu0 %v735
    %v803 = vpop.f32.mrf.mxu0
    %v804 = vadd.f32 0.0, %v803
    %v805 = vpop.f32.mrf.mxu0
    %806 = vdwg.mxu0
    %v807 = vadd.f32 %v379, %v804
    %v808 = vxor.u32 %v807, 2147483648
    %v809 = vmul.f32 %v808, 1.442695
    %v810 = vpow.pop %v809
    %v811 = vadd.f32 %v810, 1.0
    %v812 = vrcp.pop %v811
    %v813 = vmul.f32 1.0, %v812
    %v814 = vtanh.pop %v807
    %v815 = vmul.f32 %v813, %v723
    %817 = vrot.lane.b32.xlu0 %v814, 64
    %v818 = vpop.permute.xlu0 %817
    %v820 = vmul.f32 %v813, %v818
    %822 = vrot.lane.b32.xlu0 %v820, 32
    %v823 = vpop.permute.xlu0 %822
    %v825 = vadd.f32 %v815, %v823
    %v826 = vtanh.pop %v825
    %828 = vrot.lane.b32.xlu0 %v826, 64
    %v829 = vpop.permute.xlu0 %828
    %v831 = vmul.f32 %v813, %v829
    %833 = vrot.lane.b32.xlu0 %v831, 32
    %v834 = vpop.permute.xlu0 %833
    %836 = vst.msk [vmem:[#allocation2 + $0x20] sm:$0xff] %vm140, %v834
    %v837 = vsel %vm140, %v834, 0
    %839 = vmatprep.subr.mxu0 0.0
    %840 = vmatpush1.msra.mxu0 0.0
    %841 = vmatprep.subr.mxu0 0.0
    %842 = vmatpush1.msra.mxu0 0.0
    %843 = vmatprep.subr.mxu0 0.0
    %844 = vmatpush1.msra.mxu0 0.0
    %845 = vmatprep.subr.mxu0 0.0
    %846 = vmatpush1.msra.mxu0 0.0
    %847 = vmatprep.subr.mxu0 0.0
    %848 = vmatpush1.msra.mxu0 0.0
    %849 = vmatprep.subr.mxu0 0.0
    %850 = vmatpush1.msra.mxu0 0.0
    %851 = vmatprep.subr.mxu0 0.0
    %852 = vmatpush1.msra.mxu0 0.0
    %853 = vmatprep.subr.mxu0 0.0
    %854 = vmatpush1.msra.mxu0 0.0
    %855 = vmatprep.subr.mxu0 0.0
    %856 = vmatpush1.msra.mxu0 0.0
    %857 = vmatprep.subr.mxu0 0.0
    %858 = vmatpush1.msra.mxu0 0.0
    %859 = vmatprep.subr.mxu0 0.0
    %860 = vmatpush1.msra.mxu0 0.0
    %861 = vmatprep.subr.mxu0 0.0
    %862 = vmatpush1.msra.mxu0 0.0
    %863 = vmatprep.subr.mxu0 0.0
    %864 = vmatpush1.msra.mxu0 %v400
    %865 = vmatprep.subr.mxu0 0.0
    %866 = vmatpush1.msra.mxu0 %v399
    %867 = vmatprep.subr.mxu0 0.0
    %868 = vmatpush1.msra.mxu0 %v398
    %869 = vmatprep.subr.mxu0 0.0
    %870 = vmatpush1.msra.mxu0 %v397
    %871 = vmatprep.subr.mxu0 0.0
    %872 = vmatpush2.msra.mxu0 0.0
    %873 = vmatprep.subr.mxu0 0.0
    %874 = vmatpush2.msra.mxu0 0.0
    %875 = vmatprep.subr.mxu0 0.0
    %876 = vmatpush2.msra.mxu0 0.0
    %877 = vmatprep.subr.mxu0 0.0
    %878 = vmatpush2.msra.mxu0 0.0
    %879 = vmatprep.subr.mxu0 0.0
    %880 = vmatpush2.msra.mxu0 0.0
    %881 = vmatprep.subr.mxu0 0.0
    %882 = vmatpush2.msra.mxu0 0.0
    %883 = vmatprep.subr.mxu0 0.0
    %884 = vmatpush2.msra.mxu0 0.0
    %885 = vmatprep.subr.mxu0 0.0
    %886 = vmatpush2.msra.mxu0 0.0
    %887 = vmatprep.subr.mxu0 0.0
    %888 = vmatpush2.msra.mxu0 0.0
    %889 = vmatprep.subr.mxu0 0.0
    %890 = vmatpush2.msra.mxu0 0.0
    %891 = vmatprep.subr.mxu0 0.0
    %892 = vmatpush2.msra.mxu0 0.0
    %893 = vmatprep.subr.mxu0 0.0
    %894 = vmatpush2.msra.mxu0 0.0
    %895 = vmatprep.subr.mxu0 0.0
    %896 = vmatpush2.msra.mxu0 0.0
    %897 = vmatprep.subr.mxu0 0.0
    %898 = vmatpush2.msra.mxu0 0.0
    %899 = vmatprep.subr.mxu0 0.0
    %900 = vmatpush2.msra.mxu0 0.0
    %901 = vmatprep.subr.mxu0 0.0
    %902 = vmatpush2.msra.mxu0 0.0
    %903 = vmatprep.mubr.f32.mxu0 0.0
    %904 = vmatmul.mubr.f32.gmra.mxu0 %v837
    %v905 = vpop.f32.mrf.mxu0
    %v906 = vadd.f32 0.0, %v905
    %v907 = vpop.f32.mrf.mxu0
    %908 = vdwg.mxu0
    %v909 = vadd.f32 %v384, %v906
    %v910 = vxor.u32 %v909, 2147483648
    %v911 = vmul.f32 %v910, 1.442695
    %v912 = vpow.pop %v911
    %v913 = vadd.f32 %v912, 1.0
    %v914 = vrcp.pop %v913
    %v915 = vmul.f32 1.0, %v914
    %v916 = vtanh.pop %v909
    %v917 = vmul.f32 %v915, %v825
    %919 = vrot.lane.b32.xlu0 %v916, 64
    %v920 = vpop.permute.xlu0 %919
    %v922 = vmul.f32 %v915, %v920
    %924 = vrot.lane.b32.xlu0 %v922, 32
    %v925 = vpop.permute.xlu0 %924
    %v927 = vadd.f32 %v917, %v925
    %v928 = vtanh.pop %v927
    %930 = vrot.lane.b32.xlu0 %v928, 64
    %v931 = vpop.permute.xlu0 %930
    %v933 = vmul.f32 %v915, %v931
    %935 = vrot.lane.b32.xlu0 %v933, 32
    %v936 = vpop.permute.xlu0 %935
    %938 = vst.msk [vmem:[#allocation2 + $0x28] sm:$0xff] %vm140, %v936
    %v939 = vsel %vm140, %v936, 0
    %941 = vmatprep.subr.mxu0 0.0
    %942 = vmatpush1.msra.mxu0 0.0
    %943 = vmatprep.subr.mxu0 0.0
    %944 = vmatpush1.msra.mxu0 0.0
    %945 = vmatprep.subr.mxu0 0.0
    %946 = vmatpush1.msra.mxu0 0.0
    %947 = vmatprep.subr.mxu0 0.0
    %948 = vmatpush1.msra.mxu0 0.0
    %949 = vmatprep.subr.mxu0 0.0
    %950 = vmatpush1.msra.mxu0 0.0
    %951 = vmatprep.subr.mxu0 0.0
    %952 = vmatpush1.msra.mxu0 0.0
    %953 = vmatprep.subr.mxu0 0.0
    %954 = vmatpush1.msra.mxu0 0.0
    %955 = vmatprep.subr.mxu0 0.0
    %956 = vmatpush1.msra.mxu0 0.0
    %957 = vmatprep.subr.mxu0 0.0
    %958 = vmatpush1.msra.mxu0 0.0
    %959 = vmatprep.subr.mxu0 0.0
    %960 = vmatpush1.msra.mxu0 0.0
    %961 = vmatprep.subr.mxu0 0.0
    %962 = vmatpush1.msra.mxu0 0.0
    %963 = vmatprep.subr.mxu0 0.0
    %964 = vmatpush1.msra.mxu0 0.0
    %965 = vmatprep.subr.mxu0 0.0
    %966 = vmatpush1.msra.mxu0 %v400
    %967 = vmatprep.subr.mxu0 0.0
    %968 = vmatpush1.msra.mxu0 %v399
    %969 = vmatprep.subr.mxu0 0.0
    %970 = vmatpush1.msra.mxu0 %v398
    %971 = vmatprep.subr.mxu0 0.0
    %972 = vmatpush1.msra.mxu0 %v397
    %973 = vmatprep.subr.mxu0 0.0
    %974 = vmatpush2.msra.mxu0 0.0
    %975 = vmatprep.subr.mxu0 0.0
    %976 = vmatpush2.msra.mxu0 0.0
    %977 = vmatprep.subr.mxu0 0.0
    %978 = vmatpush2.msra.mxu0 0.0
    %979 = vmatprep.subr.mxu0 0.0
    %980 = vmatpush2.msra.mxu0 0.0
    %981 = vmatprep.subr.mxu0 0.0
    %982 = vmatpush2.msra.mxu0 0.0
    %983 = vmatprep.subr.mxu0 0.0
    %984 = vmatpush2.msra.mxu0 0.0
    %985 = vmatprep.subr.mxu0 0.0
    %986 = vmatpush2.msra.mxu0 0.0
    %987 = vmatprep.subr.mxu0 0.0
    %988 = vmatpush2.msra.mxu0 0.0
    %989 = vmatprep.subr.mxu0 0.0
    %990 = vmatpush2.msra.mxu0 0.0
    %991 = vmatprep.subr.mxu0 0.0
    %992 = vmatpush2.msra.mxu0 0.0
    %993 = vmatprep.subr.mxu0 0.0
    %994 = vmatpush2.msra.mxu0 0.0
    %995 = vmatprep.subr.mxu0 0.0
    %996 = vmatpush2.msra.mxu0 0.0
    %997 = vmatprep.subr.mxu0 0.0
    %998 = vmatpush2.msra.mxu0 0.0
    %999 = vmatprep.subr.mxu0 0.0
    %1000 = vmatpush2.msra.mxu0 0.0
    %1001 = vmatprep.subr.mxu0 0.0
    %1002 = vmatpush2.msra.mxu0 0.0
    %1003 = vmatprep.subr.mxu0 0.0
    %1004 = vmatpush2.msra.mxu0 0.0
    %1005 = vmatprep.mubr.f32.mxu0 0.0
    %1006 = vmatmul.mubr.f32.gmra.mxu0 %v939
    %v1007 = vpop.f32.mrf.mxu0
    %v1008 = vadd.f32 0.0, %v1007
    %v1009 = vpop.f32.mrf.mxu0
    %1010 = vdwg.mxu0
    %v1011 = vadd.f32 %v389, %v1008
    %v1012 = vxor.u32 %v1011, 2147483648
    %v1013 = vmul.f32 %v1012, 1.442695
    %v1014 = vpow.pop %v1013
    %v1015 = vadd.f32 %v1014, 1.0
    %v1016 = vrcp.pop %v1015
    %v1017 = vmul.f32 1.0, %v1016
    %v1018 = vtanh.pop %v1011
    %v1019 = vmul.f32 %v1017, %v927
    %1021 = vrot.lane.b32.xlu0 %v1018, 64
    %v1022 = vpop.permute.xlu0 %1021
    %v1024 = vmul.f32 %v1017, %v1022
    %1026 = vrot.lane.b32.xlu0 %v1024, 32
    %v1027 = vpop.permute.xlu0 %1026
    %v1029 = vadd.f32 %v1019, %v1027
    %v1030 = vtanh.pop %v1029
    %1032 = vrot.lane.b32.xlu0 %v1030, 64
    %v1033 = vpop.permute.xlu0 %1032
    %v1035 = vmul.f32 %v1017, %v1033
    %1037 = vrot.lane.b32.xlu0 %v1035, 32
    %v1038 = vpop.permute.xlu0 %1037
    %1040 = vst.msk [vmem:[#allocation2 + $0x30] sm:$0xff] %vm140, %v1038
    %v1041 = vsel %vm140, %v1038, 0
    %1043 = vmatprep.subr.mxu0 0.0
    %1044 = vmatpush1.msra.mxu0 0.0
    %1045 = vmatprep.subr.mxu0 0.0
    %1046 = vmatpush1.msra.mxu0 0.0
    %1047 = vmatprep.subr.mxu0 0.0
    %1048 = vmatpush1.msra.mxu0 0.0
    %1049 = vmatprep.subr.mxu0 0.0
    %1050 = vmatpush1.msra.mxu0 0.0
    %1051 = vmatprep.subr.mxu0 0.0
    %1052 = vmatpush1.msra.mxu0 0.0
    %1053 = vmatprep.subr.mxu0 0.0
    %1054 = vmatpush1.msra.mxu0 0.0
    %1055 = vmatprep.subr.mxu0 0.0
    %1056 = vmatpush1.msra.mxu0 0.0
    %1057 = vmatprep.subr.mxu0 0.0
    %1058 = vmatpush1.msra.mxu0 0.0
    %1059 = vmatprep.subr.mxu0 0.0
    %1060 = vmatpush1.msra.mxu0 0.0
    %1061 = vmatprep.subr.mxu0 0.0
    %1062 = vmatpush1.msra.mxu0 0.0
    %1063 = vmatprep.subr.mxu0 0.0
    %1064 = vmatpush1.msra.mxu0 0.0
    %1065 = vmatprep.subr.mxu0 0.0
    %1066 = vmatpush1.msra.mxu0 0.0
    %1067 = vmatprep.subr.mxu0 0.0
    %1068 = vmatpush1.msra.mxu0 %v400
    %1069 = vmatprep.subr.mxu0 0.0
    %1070 = vmatpush1.msra.mxu0 %v399
    %1071 = vmatprep.subr.mxu0 0.0
    %1072 = vmatpush1.msra.mxu0 %v398
    %1073 = vmatprep.subr.mxu0 0.0
    %1074 = vmatpush1.msra.mxu0 %v397
    %1075 = vmatprep.subr.mxu0 0.0
    %1076 = vmatpush2.msra.mxu0 0.0
    %1077 = vmatprep.subr.mxu0 0.0
    %1078 = vmatpush2.msra.mxu0 0.0
    %1079 = vmatprep.subr.mxu0 0.0
    %1080 = vmatpush2.msra.mxu0 0.0
    %1081 = vmatprep.subr.mxu0 0.0
    %1082 = vmatpush2.msra.mxu0 0.0
    %1083 = vmatprep.subr.mxu0 0.0
    %1084 = vmatpush2.msra.mxu0 0.0
    %1085 = vmatprep.subr.mxu0 0.0
    %1086 = vmatpush2.msra.mxu0 0.0
    %1087 = vmatprep.subr.mxu0 0.0
    %1088 = vmatpush2.msra.mxu0 0.0
    %1089 = vmatprep.subr.mxu0 0.0
    %1090 = vmatpush2.msra.mxu0 0.0
    %1091 = vmatprep.subr.mxu0 0.0
    %1092 = vmatpush2.msra.mxu0 0.0
    %1093 = vmatprep.subr.mxu0 0.0
    %1094 = vmatpush2.msra.mxu0 0.0
    %1095 = vmatprep.subr.mxu0 0.0
    %1096 = vmatpush2.msra.mxu0 0.0
    %1097 = vmatprep.subr.mxu0 0.0
    %1098 = vmatpush2.msra.mxu0 0.0
    %1099 = vmatprep.subr.mxu0 0.0
    %1100 = vmatpush2.msra.mxu0 0.0
    %1101 = vmatprep.subr.mxu0 0.0
    %1102 = vmatpush2.msra.mxu0 0.0
    %1103 = vmatprep.subr.mxu0 0.0
    %1104 = vmatpush2.msra.mxu0 0.0
    %1105 = vmatprep.subr.mxu0 0.0
    %1106 = vmatpush2.msra.mxu0 0.0
    %1107 = vmatprep.mubr.f32.mxu0 0.0
    %1108 = vmatmul.mubr.f32.gmra.mxu0 %v1041
    %v1109 = vpop.f32.mrf.mxu0
    %v1110 = vadd.f32 0.0, %v1109
    %v1111 = vpop.f32.mrf.mxu0
    %1112 = vdwg.mxu0
    %v1113 = vadd.f32 %v394, %v1110
    %v1114 = vxor.u32 %v1113, 2147483648
    %v1115 = vmul.f32 %v1114, 1.442695
    %v1116 = vpow.pop %v1115
    %v1117 = vadd.f32 %v1116, 1.0
    %v1118 = vrcp.pop %v1117
    %v1119 = vmul.f32 1.0, %v1118
    %v1120 = vtanh.pop %v1113
    %v1121 = vmul.f32 %v1119, %v1029
    %1123 = vrot.lane.b32.xlu0 %v1120, 64
    %v1124 = vpop.permute.xlu0 %1123
    %v1126 = vmul.f32 %v1119, %v1124
    %1128 = vrot.lane.b32.xlu0 %v1126, 32
    %v1129 = vpop.permute.xlu0 %1128
    %v1131 = vadd.f32 %v1121, %v1129
    %v1132 = vtanh.pop %v1131
    %1134 = vrot.lane.b32.xlu0 %v1132, 64
    %v1135 = vpop.permute.xlu0 %1134
    %v1137 = vmul.f32 %v1119, %v1135
    %1139 = vrot.lane.b32.xlu0 %v1137, 32
    %v1140 = vpop.permute.xlu0 %1139
    %1142 = vst.msk [vmem:[#allocation2 + $0x38] sm:$0xff] %vm140, %v1140
    %vm1143 = vcmp.ne.s32.totalorder %v33, 0
    %vm1144 = vcmp.ne.s32.totalorder %v34, 0
    %vm1145 = vcmp.ne.s32.totalorder %v35, 0
    %vm1146 = vcmp.ne.s32.totalorder %v36, 0
    %vm1147 = vcmp.ne.s32.totalorder %v37, 0
    %vm1148 = vcmp.ne.s32.totalorder %v38, 0
    %vm1149 = vcmp.ne.s32.totalorder %v39, 0
    %vm1150 = vcmp.ne.s32.totalorder %v40, 0
    %v1151 = vsel %vm1143, 1, 0
    %v1152 = vsel %vm1144, 1, 0
    %v1153 = vsel %vm1145, 1, 0
    %v1154 = vsel %vm1146, 1, 0
    %v1155 = vsel %vm1147, 1, 0
    %v1156 = vsel %vm1148, 1, 0
    %v1157 = vsel %vm1149, 1, 0
    %v1158 = vsel %vm1150, 1, 0
    %v1159 = vcvt.s32.f32 %v1151
    %v1160 = vcvt.s32.f32 %v1152
    %v1161 = vcvt.s32.f32 %v1153
    %v1162 = vcvt.s32.f32 %v1154
    %v1163 = vcvt.s32.f32 %v1155
    %v1164 = vcvt.s32.f32 %v1156
    %v1165 = vcvt.s32.f32 %v1157
    %v1166 = vcvt.s32.f32 %v1158
    %v1167 = vld [vmem:[#allocation2] sm:$0xff]
    %v1168 = vld [vmem:[#allocation2 + $0x8] sm:$0xff]
    %v1169 = vld [vmem:[#allocation2 + $0x10] sm:$0xff]
    %v1170 = vld [vmem:[#allocation2 + $0x18] sm:$0xff]
    %v1171 = vld [vmem:[#allocation2 + $0x20] sm:$0xff]
    %v1172 = vld [vmem:[#allocation2 + $0x28] sm:$0xff]
    %v1173 = vld [vmem:[#allocation2 + $0x30] sm:$0xff]
    %v1174 = vld [vmem:[#allocation2 + $0x38] sm:$0xff]
    %1176 = vset.pattern.permute.xlu0 0
    %1177 = vperm.xlu0 %1176, %v1159
    %v1178 = vpop.permute.xlu0 %1177
    %1181 = vset.pattern.permute.xlu0 0
    %1182 = vperm.xlu0 %1181, %v1160
    %v1183 = vpop.permute.xlu0 %1182
    %1186 = vset.pattern.permute.xlu0 0
    %1187 = vperm.xlu0 %1186, %v1161
    %v1188 = vpop.permute.xlu0 %1187
    %1191 = vset.pattern.permute.xlu0 0
    %1192 = vperm.xlu0 %1191, %v1162
    %v1193 = vpop.permute.xlu0 %1192
    %1196 = vset.pattern.permute.xlu0 0
    %1197 = vperm.xlu0 %1196, %v1163
    %v1198 = vpop.permute.xlu0 %1197
    %1201 = vset.pattern.permute.xlu0 0
    %1202 = vperm.xlu0 %1201, %v1164
    %v1203 = vpop.permute.xlu0 %1202
    %1206 = vset.pattern.permute.xlu0 0
    %1207 = vperm.xlu0 %1206, %v1165
    %v1208 = vpop.permute.xlu0 %1207
    %1211 = vset.pattern.permute.xlu0 0
    %1212 = vperm.xlu0 %1211, %v1166
    %v1213 = vpop.permute.xlu0 %1212
    %v1215 = vmul.f32 %v1167, %v1178
    %v1216 = vmul.f32 %v1168, %v1183
    %v1217 = vmul.f32 %v1169, %v1188
    %v1218 = vmul.f32 %v1170, %v1193
    %v1219 = vmul.f32 %v1171, %v1198
    %v1220 = vmul.f32 %v1172, %v1203
    %v1221 = vmul.f32 %v1173, %v1208
    %v1222 = vmul.f32 %v1174, %v1213
    %v1223 = vld [vmem:[%s7] sm:$0xff]
    %v1224 = vld [vmem:[%s7 + $0x8] sm:$0xff]
    %v1225 = vld [vmem:[%s7 + $0x10] sm:$0xff]
    %v1226 = vld [vmem:[%s7 + $0x18] sm:$0xff]
    %v1227 = vld [vmem:[%s8] sm:$0x1]
    %v1229 = vlaneseq
    %v1230 = vshrl.u32 %v1229, 7
    %v1231 = vsub.s32 0, %v1230
    %v1232 = vrot.slane %v1227, %v1231
    %v1235 = vsel %vm140, %v1215, 0
    %v1238 = vsel %vm140, %v1216, 0
    %v1241 = vsel %vm140, %v1217, 0
    %v1244 = vsel %vm140, %v1218, 0
    %v1247 = vsel %vm140, %v1219, 0
    %v1250 = vsel %vm140, %v1220, 0
    %v1253 = vsel %vm140, %v1221, 0
    %v1256 = vsel %vm140, %v1222, 0
    %1258 = vmatprep.subr.mxu0 0.0
    %1259 = vmatpush1.msra.mxu0 0.0
    %1260 = vmatprep.subr.mxu0 0.0
    %1261 = vmatpush1.msra.mxu0 0.0
    %1262 = vmatprep.subr.mxu0 0.0
    %1263 = vmatpush1.msra.mxu0 0.0
    %1264 = vmatprep.subr.mxu0 0.0
    %1265 = vmatpush1.msra.mxu0 0.0
    %1266 = vmatprep.subr.mxu0 0.0
    %1267 = vmatpush1.msra.mxu0 0.0
    %1268 = vmatprep.subr.mxu0 0.0
    %1269 = vmatpush1.msra.mxu0 0.0
    %1270 = vmatprep.subr.mxu0 0.0
    %1271 = vmatpush1.msra.mxu0 0.0
    %1272 = vmatprep.subr.mxu0 0.0
    %1273 = vmatpush1.msra.mxu0 0.0
    %1274 = vmatprep.subr.mxu0 0.0
    %1275 = vmatpush1.msra.mxu0 0.0
    %1276 = vmatprep.subr.mxu0 0.0
    %1277 = vmatpush1.msra.mxu0 0.0
    %1278 = vmatprep.subr.mxu0 0.0
    %1279 = vmatpush1.msra.mxu0 0.0
    %1280 = vmatprep.subr.mxu0 0.0
    %1281 = vmatpush1.msra.mxu0 0.0
    %1282 = vmatprep.subr.mxu0 0.0
    %1283 = vmatpush1.msra.mxu0 %v1226
    %1284 = vmatprep.subr.mxu0 0.0
    %1285 = vmatpush1.msra.mxu0 %v1225
    %1286 = vmatprep.subr.mxu0 0.0
    %1287 = vmatpush1.msra.mxu0 %v1224
    %1288 = vmatprep.subr.mxu0 0.0
    %1289 = vmatpush1.msra.mxu0 %v1223
    %1290 = vmatprep.subr.mxu0 0.0
    %1291 = vmatpush2.msra.mxu0 0.0
    %1292 = vmatprep.subr.mxu0 0.0
    %1293 = vmatpush2.msra.mxu0 0.0
    %1294 = vmatprep.subr.mxu0 0.0
    %1295 = vmatpush2.msra.mxu0 0.0
    %1296 = vmatprep.subr.mxu0 0.0
    %1297 = vmatpush2.msra.mxu0 0.0
    %1298 = vmatprep.subr.mxu0 0.0
    %1299 = vmatpush2.msra.mxu0 0.0
    %1300 = vmatprep.subr.mxu0 0.0
    %1301 = vmatpush2.msra.mxu0 0.0
    %1302 = vmatprep.subr.mxu0 0.0
    %1303 = vmatpush2.msra.mxu0 0.0
    %1304 = vmatprep.subr.mxu0 0.0
    %1305 = vmatpush2.msra.mxu0 0.0
    %1306 = vmatprep.subr.mxu0 0.0
    %1307 = vmatpush2.msra.mxu0 0.0
    %1308 = vmatprep.subr.mxu0 0.0
    %1309 = vmatpush2.msra.mxu0 0.0
    %1310 = vmatprep.subr.mxu0 0.0
    %1311 = vmatpush2.msra.mxu0 0.0
    %1312 = vmatprep.subr.mxu0 0.0
    %1313 = vmatpush2.msra.mxu0 0.0
    %1314 = vmatprep.subr.mxu0 0.0
    %1315 = vmatpush2.msra.mxu0 0.0
    %1316 = vmatprep.subr.mxu0 0.0
    %1317 = vmatpush2.msra.mxu0 0.0
    %1318 = vmatprep.subr.mxu0 0.0
    %1319 = vmatpush2.msra.mxu0 0.0
    %1320 = vmatprep.subr.mxu0 0.0
    %1321 = vmatpush2.msra.mxu0 0.0
    %1322 = vmatprep.mubr.f32.mxu0 0.0
    %1323 = vmatmul.mubr.f32.gmra.mxu0 %v1235
    %v1324 = vpop.f32.mrf.mxu0
    %v1325 = vadd.f32 %v1232, %v1324
    %v1326 = vpop.f32.mrf.mxu0
    %1327 = vmatprep.mubr.f32.mxu0 0.0
    %1328 = vmatmul.mubr.f32.gmra.mxu0 %v1238
    %v1329 = vpop.f32.mrf.mxu0
    %v1330 = vadd.f32 %v1232, %v1329
    %v1331 = vpop.f32.mrf.mxu0
    %1332 = vmatprep.mubr.f32.mxu0 0.0
    %1333 = vmatmul.mubr.f32.gmra.mxu0 %v1241
    %v1334 = vpop.f32.mrf.mxu0
    %v1335 = vadd.f32 %v1232, %v1334
    %v1336 = vpop.f32.mrf.mxu0
    %1337 = vmatprep.mubr.f32.mxu0 0.0
    %1338 = vmatmul.mubr.f32.gmra.mxu0 %v1244
    %v1339 = vpop.f32.mrf.mxu0
    %v1340 = vadd.f32 %v1232, %v1339
    %v1341 = vpop.f32.mrf.mxu0
    %1342 = vmatprep.mubr.f32.mxu0 0.0
    %1343 = vmatmul.mubr.f32.gmra.mxu0 %v1247
    %v1344 = vpop.f32.mrf.mxu0
    %v1345 = vadd.f32 %v1232, %v1344
    %v1346 = vpop.f32.mrf.mxu0
    %1347 = vmatprep.mubr.f32.mxu0 0.0
    %1348 = vmatmul.mubr.f32.gmra.mxu0 %v1250
    %v1349 = vpop.f32.mrf.mxu0
    %v1350 = vadd.f32 %v1232, %v1349
    %v1351 = vpop.f32.mrf.mxu0
    %1352 = vmatprep.mubr.f32.mxu0 0.0
    %1353 = vmatmul.mubr.f32.gmra.mxu0 %v1253
    %v1354 = vpop.f32.mrf.mxu0
    %v1355 = vadd.f32 %v1232, %v1354
    %v1356 = vpop.f32.mrf.mxu0
    %1357 = vmatprep.mubr.f32.mxu0 0.0
    %1358 = vmatmul.mubr.f32.gmra.mxu0 %v1256
    %v1359 = vpop.f32.mrf.mxu0
    %v1360 = vadd.f32 %v1232, %v1359
    %v1361 = vpop.f32.mrf.mxu0
    %1362 = vdwg.mxu0
    %1363 = vset.pattern.permute.xlu0 1
    %1364 = vperm.xlu0 %1363, %v33
    %v1365 = vpop.permute.xlu0 %1364
    %1366 = vset.pattern.permute.xlu0 1
    %1367 = vperm.xlu0 %1366, %v34
    %v1368 = vpop.permute.xlu0 %1367
    %1369 = vset.pattern.permute.xlu0 1
    %1370 = vperm.xlu0 %1369, %v35
    %v1371 = vpop.permute.xlu0 %1370
    %1372 = vset.pattern.permute.xlu0 1
    %1373 = vperm.xlu0 %1372, %v36
    %v1374 = vpop.permute.xlu0 %1373
    %1375 = vset.pattern.permute.xlu0 1
    %1376 = vperm.xlu0 %1375, %v37
    %v1377 = vpop.permute.xlu0 %1376
    %1378 = vset.pattern.permute.xlu0 1
    %1379 = vperm.xlu0 %1378, %v38
    %v1380 = vpop.permute.xlu0 %1379
    %1381 = vset.pattern.permute.xlu0 1
    %1382 = vperm.xlu0 %1381, %v39
    %v1383 = vpop.permute.xlu0 %1382
    %1384 = vset.pattern.permute.xlu0 1
    %1385 = vperm.xlu0 %1384, %v40
    %v1386 = vpop.permute.xlu0 %1385
    %vm1387 = vcmp.eq.s32.totalorder %v1365, %v215
    %vm1388 = vcmp.eq.s32.totalorder %v1368, %v215
    %vm1389 = vcmp.eq.s32.totalorder %v1371, %v215
    %vm1390 = vcmp.eq.s32.totalorder %v1374, %v215
    %vm1391 = vcmp.eq.s32.totalorder %v1377, %v215
    %vm1392 = vcmp.eq.s32.totalorder %v1380, %v215
    %vm1393 = vcmp.eq.s32.totalorder %v1383, %v215
    %vm1394 = vcmp.eq.s32.totalorder %v1386, %v215
    %v1395 = vsel %vm1387, 1, 0
    %v1396 = vsel %vm1388, 1, 0
    %v1397 = vsel %vm1389, 1, 0
    %v1398 = vsel %vm1390, 1, 0
    %v1399 = vsel %vm1391, 1, 0
    %v1400 = vsel %vm1392, 1, 0
    %v1401 = vsel %vm1393, 1, 0
    %v1402 = vsel %vm1394, 1, 0
    %v1403 = vcvt.s32.f32 %v1395
    %v1404 = vcvt.s32.f32 %v1396
    %v1405 = vcvt.s32.f32 %v1397
    %v1406 = vcvt.s32.f32 %v1398
    %v1407 = vcvt.s32.f32 %v1399
    %v1408 = vcvt.s32.f32 %v1400
    %v1409 = vcvt.s32.f32 %v1401
    %v1410 = vcvt.s32.f32 %v1402
    %v1411 = vsel %vm140, %v1325, -inf
    %1412 = vmax.xlane.f32.xlu0 %v1411
    %v1413 = vpop.xlane.xlu0 %1412
    %v1414 = vsel %vm140, %v1330, -inf
    %1415 = vmax.xlane.f32.xlu0 %v1414
    %v1416 = vpop.xlane.xlu0 %1415
    %v1417 = vsel %vm140, %v1335, -inf
    %1418 = vmax.xlane.f32.xlu0 %v1417
    %v1419 = vpop.xlane.xlu0 %1418
    %v1420 = vsel %vm140, %v1340, -inf
    %1421 = vmax.xlane.f32.xlu0 %v1420
    %v1422 = vpop.xlane.xlu0 %1421
    %v1423 = vsel %vm140, %v1345, -inf
    %1424 = vmax.xlane.f32.xlu0 %v1423
    %v1425 = vpop.xlane.xlu0 %1424
    %v1426 = vsel %vm140, %v1350, -inf
    %1427 = vmax.xlane.f32.xlu0 %v1426
    %v1428 = vpop.xlane.xlu0 %1427
    %v1429 = vsel %vm140, %v1355, -inf
    %1430 = vmax.xlane.f32.xlu0 %v1429
    %v1431 = vpop.xlane.xlu0 %1430
    %v1432 = vsel %vm140, %v1360, -inf
    %1433 = vmax.xlane.f32.xlu0 %v1432
    %v1434 = vpop.xlane.xlu0 %1433
    %v1435 = vsub.f32 %v1325, %v1413
    %v1436 = vsub.f32 %v1330, %v1416
    %v1437 = vsub.f32 %v1335, %v1419
    %v1438 = vsub.f32 %v1340, %v1422
    %v1439 = vsub.f32 %v1345, %v1425
    %v1440 = vsub.f32 %v1350, %v1428
    %v1441 = vsub.f32 %v1355, %v1431
    %v1442 = vsub.f32 %v1360, %v1434
    %v1443 = vmul.f32 %v1435, 1.442695
    %v1444 = vpow.pop %v1443
    %v1445 = vmul.f32 %v1436, 1.442695
    %v1446 = vpow.pop %v1445
    %v1447 = vmul.f32 %v1437, 1.442695
    %v1448 = vpow.pop %v1447
    %v1449 = vmul.f32 %v1438, 1.442695
    %v1450 = vpow.pop %v1449
    %v1451 = vmul.f32 %v1439, 1.442695
    %v1452 = vpow.pop %v1451
    %v1453 = vmul.f32 %v1440, 1.442695
    %v1454 = vpow.pop %v1453
    %v1455 = vmul.f32 %v1441, 1.442695
    %v1456 = vpow.pop %v1455
    %v1457 = vmul.f32 %v1442, 1.442695
    %v1458 = vpow.pop %v1457
    %v1459 = vsel %vm140, %v1444, 0.0
    %1460 = vadd.xlane.f32.xlu0 %v1459
    %v1461 = vpop.xlane.xlu0 %1460
    %v1462 = vsel %vm140, %v1446, 0.0
    %1463 = vadd.xlane.f32.xlu0 %v1462
    %v1464 = vpop.xlane.xlu0 %1463
    %v1465 = vsel %vm140, %v1448, 0.0
    %1466 = vadd.xlane.f32.xlu0 %v1465
    %v1467 = vpop.xlane.xlu0 %1466
    %v1468 = vsel %vm140, %v1450, 0.0
    %1469 = vadd.xlane.f32.xlu0 %v1468
    %v1470 = vpop.xlane.xlu0 %1469
    %v1471 = vsel %vm140, %v1452, 0.0
    %1472 = vadd.xlane.f32.xlu0 %v1471
    %v1473 = vpop.xlane.xlu0 %1472
    %v1474 = vsel %vm140, %v1454, 0.0
    %1475 = vadd.xlane.f32.xlu0 %v1474
    %v1476 = vpop.xlane.xlu0 %1475
    %v1477 = vsel %vm140, %v1456, 0.0
    %1478 = vadd.xlane.f32.xlu0 %v1477
    %v1479 = vpop.xlane.xlu0 %1478
    %v1480 = vsel %vm140, %v1458, 0.0
    %1481 = vadd.xlane.f32.xlu0 %v1480
    %v1482 = vpop.xlane.xlu0 %1481
    %v1483 = vlog2.pop %v1461
    %v1484 = vmul.f32 %v1483, 0.6931472
    %v1485 = vlog2.pop %v1464
    %v1486 = vmul.f32 %v1485, 0.6931472
    %v1487 = vlog2.pop %v1467
    %v1488 = vmul.f32 %v1487, 0.6931472
    %v1489 = vlog2.pop %v1470
    %v1490 = vmul.f32 %v1489, 0.6931472
    %v1491 = vlog2.pop %v1473
    %v1492 = vmul.f32 %v1491, 0.6931472
    %v1493 = vlog2.pop %v1476
    %v1494 = vmul.f32 %v1493, 0.6931472
    %v1495 = vlog2.pop %v1479
    %v1496 = vmul.f32 %v1495, 0.6931472
    %v1497 = vlog2.pop %v1482
    %v1498 = vmul.f32 %v1497, 0.6931472
    %v1499 = vadd.f32 %v1484, %v1413
    %v1500 = vadd.f32 %v1486, %v1416
    %v1501 = vadd.f32 %v1488, %v1419
    %v1502 = vadd.f32 %v1490, %v1422
    %v1503 = vadd.f32 %v1492, %v1425
    %v1504 = vadd.f32 %v1494, %v1428
    %v1505 = vadd.f32 %v1496, %v1431
    %v1506 = vadd.f32 %v1498, %v1434
    %v1507 = vmul.f32 %v1325, %v1403
    %v1508 = vmul.f32 %v1330, %v1404
    %v1509 = vmul.f32 %v1335, %v1405
    %v1510 = vmul.f32 %v1340, %v1406
    %v1511 = vmul.f32 %v1345, %v1407
    %v1512 = vmul.f32 %v1350, %v1408
    %v1513 = vmul.f32 %v1355, %v1409
    %v1514 = vmul.f32 %v1360, %v1410
    %v1515 = vsel %vm140, %v1507, 0.0
    %1516 = vadd.xlane.f32.xlu0 %v1515
    %v1517 = vpop.xlane.xlu0 %1516
    %v1518 = vsel %vm140, %v1508, 0.0
    %1519 = vadd.xlane.f32.xlu0 %v1518
    %v1520 = vpop.xlane.xlu0 %1519
    %v1521 = vsel %vm140, %v1509, 0.0
    %1522 = vadd.xlane.f32.xlu0 %v1521
    %v1523 = vpop.xlane.xlu0 %1522
    %v1524 = vsel %vm140, %v1510, 0.0
    %1525 = vadd.xlane.f32.xlu0 %v1524
    %v1526 = vpop.xlane.xlu0 %1525
    %v1527 = vsel %vm140, %v1511, 0.0
    %1528 = vadd.xlane.f32.xlu0 %v1527
    %v1529 = vpop.xlane.xlu0 %1528
    %v1530 = vsel %vm140, %v1512, 0.0
    %1531 = vadd.xlane.f32.xlu0 %v1530
    %v1532 = vpop.xlane.xlu0 %1531
    %v1533 = vsel %vm140, %v1513, 0.0
    %1534 = vadd.xlane.f32.xlu0 %v1533
    %v1535 = vpop.xlane.xlu0 %1534
    %v1536 = vsel %vm140, %v1514, 0.0
    %1537 = vadd.xlane.f32.xlu0 %v1536
    %v1538 = vpop.xlane.xlu0 %1537
    %v1539 = vsub.f32 %v1499, %v1517
    %v1540 = vsub.f32 %v1500, %v1520
    %v1541 = vsub.f32 %v1501, %v1523
    %v1542 = vsub.f32 %v1502, %v1526
    %v1543 = vsub.f32 %v1503, %v1529
    %v1544 = vsub.f32 %v1504, %v1532
    %v1545 = vsub.f32 %v1505, %v1535
    %v1546 = vsub.f32 %v1506, %v1538
    %v1547 = vmul.f32 %v1539, %v1159
    %v1548 = vmul.f32 %v1540, %v1160
    %v1549 = vmul.f32 %v1541, %v1161
    %v1550 = vmul.f32 %v1542, %v1162
    %v1551 = vmul.f32 %v1543, %v1163
    %v1552 = vmul.f32 %v1544, %v1164
    %v1553 = vmul.f32 %v1545, %v1165
    %v1554 = vmul.f32 %v1546, %v1166
    %vm1555 = vcmask 15368
    %v1556 = vsel %vm1555, %v1547, 0.0
    %v1557 = vsel %vm1555, %v1548, 0.0
    %v1558 = vadd.f32 %v1556, %v1557
    %v1559 = vsel %vm1555, %v1549, 0.0
    %v1560 = vadd.f32 %v1558, %v1559
    %v1561 = vsel %vm1555, %v1550, 0.0
    %v1562 = vadd.f32 %v1560, %v1561
    %v1563 = vsel %vm1555, %v1551, 0.0
    %v1564 = vadd.f32 %v1562, %v1563
    %v1565 = vsel %vm1555, %v1552, 0.0
    %v1566 = vadd.f32 %v1564, %v1565
    %v1567 = vsel %vm1555, %v1553, 0.0
    %v1568 = vadd.f32 %v1566, %v1567
    %v1569 = vsel %vm1555, %v1554, 0.0
    %v1570 = vadd.f32 %v1568, %v1569
    %v1571 = vrot.slane %v1570, 4
    %v1572 = vadd.f32 %v1570, %v1571
    %v1573 = vrot.slane %v1572, 2
    %v1574 = vadd.f32 %v1572, %v1573
    %v1575 = vrot.slane %v1574, 1
    %v1576 = vadd.f32 %v1574, %v1575
    %v1577 = vsel %vm1555, %v1159, 0.0
    %v1578 = vsel %vm1555, %v1160, 0.0
    %v1579 = vadd.f32 %v1577, %v1578
    %v1580 = vsel %vm1555, %v1161, 0.0
    %v1581 = vadd.f32 %v1579, %v1580
    %v1582 = vsel %vm1555, %v1162, 0.0
    %v1583 = vadd.f32 %v1581, %v1582
    %v1584 = vsel %vm1555, %v1163, 0.0
    %v1585 = vadd.f32 %v1583, %v1584
    %v1586 = vsel %vm1555, %v1164, 0.0
    %v1587 = vadd.f32 %v1585, %v1586
    %v1588 = vsel %vm1555, %v1165, 0.0
    %v1589 = vadd.f32 %v1587, %v1588
    %v1590 = vsel %vm1555, %v1166, 0.0
    %v1591 = vadd.f32 %v1589, %v1590
    %v1592 = vrot.slane %v1591, 4
    %v1593 = vadd.f32 %v1591, %v1592
    %v1594 = vrot.slane %v1593, 2
    %v1595 = vadd.f32 %v1593, %v1594
    %v1596 = vrot.slane %v1595, 1
    %v1597 = vadd.f32 %v1595, %v1596
    %v1598 = vmax.f32 %v1597, 1.0
    %v1599 = vrcp.pop %v1598
    %v1600 = vmul.f32 %v1576, %v1599
    %1602 = vrot.lane.b32.xlu0 %v1600, 127
    %v1603 = vpop.permute.xlu0 %1602
    %vm1605 = vcmask 0
    %1606 = vst.msk [vmem:[#allocation3] sm:$0x1] %vm1605, %v1603
    // Predicated region
    $region38: #{lang_lang_reconstruct_loss.1} parent=1 // pred_check
      _
    $region39: #{lang_lang_reconstruct_loss.1} parent=1 // pred_check_branch
      %1608 = sbr.rel (0) target = $region41
    $region40: #{lang_lang_reconstruct_loss.1} parent=1 // pred_region
      %s1610 = ssub.s32 16, 16
      %1611 = vsyncadd [#allocation4], %s1610
      %s1613 = sshll.u32 [#allocation3], 4
      %s1614 = int_to_ptr.vmem [resolvable:$true] %s1613
      %1616 = dma.vmem_to_hbm [thread:$0]  %s1614, 16, %s9, [#allocation4]
    $region41: #{lang_lang_reconstruct_loss.1} parent=1 // pred_fallthru
      _
    // Predicated region
    $region42: #{lang_lang_reconstruct_loss.1} parent=1 // pred_check
      _
    $region43: #{lang_lang_reconstruct_loss.1} parent=1 // pred_check_branch
      %1618 = sbr.rel (0) target = $region45
    $region44: #{lang_lang_reconstruct_loss.1} parent=1 // pred_region
      %1619 = dma.done [#allocation4], 16
    $region45: #{lang_lang_reconstruct_loss.1} parent=1 // pred_fallthru
      _
    %1620 = vsyncpa [#allocation4], 1

</llo_original>
